<compile_context>
chip_gen: v6e
topology: v6e:2x2x1
jax: 0.10.0
libtpu: 0.0.40
codegen_flags: <defaults>
</compile_context>

<pallas_src>
import jax
import jax.numpy as jnp
from jax.experimental import pallas as pl
from jax.experimental.pallas import tpu as pltpu

EMB = 128      # embedding_size (reduced from 512)
H1 = EMB       # gru1 hidden == embedding_size (as in the module)
H2 = 128       # gru2 hidden (hard-coded 128 in the module)
HL1 = 32       # linear1 out features
NCLS = 2       # linear2 out features
VOCAB = 256    # reduced vocab (from 25002)
G = 3 * H1     # packed gate width (3*H1 == 3*H2 == 384)


def _make_kernel(Lx, Ly):
    """Build a kernel closure for static sequence lengths Lx, Ly."""
    Lmin = min(Lx, Ly)
    Lmax = max(Lx, Ly)

    def gru_step(g, h, whh_bf16, bhh_n, hid):
        # g: (rows, 3*hid) f32 input-side gates (bias already folded in)
        gh = jnp.dot(h.astype(jnp.bfloat16), whh_bf16,
                     preferred_element_type=jnp.float32)
        rz = jax.nn.sigmoid(g[:, 0:2 * hid] + gh[:, 0:2 * hid])   # fused r|z
        r = rz[:, 0:hid]
        z = rz[:, hid:2 * hid]
        n = jnp.tanh(g[:, 2 * hid:3 * hid] + r * (gh[:, 2 * hid:3 * hid] + bhh_n))
        return (1.0 - z) * n + z * h

    def kernel(xids_ref, yids_ref, gxt_ref, wgru_ref, w1_ref, w2_ref, b_ref,
               out_ref):
        # ---- gru1 weights only (shrink live ranges across the serial loop) ----
        whh1 = wgru_ref[0 * H1:1 * H1, :]                 # (H1, 3*H1) bf16
        bhh1_n = b_ref[0:1, 0:H1]                         # (1, H1) f32
        bhh1_n2 = jnp.concatenate([bhh1_n, bhh1_n], axis=0)   # hoisted (2, H1)

        # ---- gru1: x and y recurrences fused into a 2-row hidden state ----
        # gx rows come straight from the pre-multiplied gx-table (VMEM gather).
        h1 = jnp.zeros((2, H1), jnp.float32)
        for i in range(Lmin):
            gx = gxt_ref[pl.ds(xids_ref[i], 1), :]        # (1, 3*H1)
            gy = gxt_ref[pl.ds(yids_ref[i], 1), :]
            g = jnp.concatenate([gx, gy], axis=0)         # (2, 3*H1)
            h1 = gru_step(g, h1, whh1, bhh1_n2, H1)

        # ---- tail: only the longer sequence keeps stepping (1-row hidden) ----
        if Lx != Ly:
            if Lx > Ly:
                h_t = h1[0:1, :]
            else:
                h_t = h1[1:2, :]
            for i in range(Lmin, Lmax):
                if Lx > Ly:
                    g = gxt_ref[pl.ds(xids_ref[i], 1), :]
                else:
                    g = gxt_ref[pl.ds(yids_ref[i], 1), :]
                h_t = gru_step(g, h_t, whh1, bhh1_n, H1)
            if Lx > Ly:
                h1 = jnp.concatenate([h_t, h1[1:2, :]], axis=0)
            else:
                h1 = jnp.concatenate([h1[0:1, :], h_t], axis=0)

        # ---- gru2: weights/biases loaded only now (after gru1) ----
        wih2 = wgru_ref[1 * H1:2 * H1, :]                 # (EMB, 3*H2) bf16
        whh2 = wgru_ref[2 * H1:3 * H1, :]                 # (H2, 3*H2) bf16
        gx2_bias = b_ref[1:2, :]                          # bih2 with bhh2_{r,z} folded
        bhh2_n = b_ref[2:3, 0:H2]

        # Both input projections (hidden_x row 0, hidden_y row 1) in one matmul.
        gx2 = jnp.dot(h1.astype(jnp.bfloat16), wih2,
                      preferred_element_type=jnp.float32) + gx2_bias
        h2 = jnp.zeros((1, H2), jnp.float32)
        for s in range(2):                                # x then y, as in the module
            h2 = gru_step(gx2[s:s + 1, :], h2, whh2, bhh2_n, H2)

        # ---- relu(linear1) -> relu(linear2) -> log_softmax ----
        b1 = b_ref[3:4, 0:HL1]
        b2 = b_ref[4:5, 0:NCLS]
        o = jnp.maximum(jnp.dot(h2, w1_ref[...],
                                preferred_element_type=jnp.float32) + b1, 0.0)
        o = jnp.maximum(jnp.dot(o, w2_ref[...],
                                preferred_element_type=jnp.float32) + b2, 0.0)
        m = jnp.max(o, axis=1, keepdims=True)
        sh = o - m
        out_ref[...] = sh - jnp.log(jnp.sum(jnp.exp(sh), axis=1, keepdims=True))

    return kernel


def pack_params(p):
    """One-time re-layout of PyTorch-style params into kernel-friendly tensors."""
    def fold_bias(bih, bhh, H):
        # r/z gate biases can be pre-summed; the n-gate bhh stays separate
        # because it sits inside r * (h @ whh_n + bhh_n).
        gb = jnp.concatenate([bih[0:H] + bhh[0:H],
                              bih[H:2 * H] + bhh[H:2 * H],
                              bih[2 * H:3 * H]])
        return gb, bhh[2 * H:3 * H]

    gb1, bn1 = fold_bias(p["bih1"], p["bhh1"], H1)
    gb2, bn2 = fold_bias(p["bih2"], p["bhh2"], H2)

    # Pre-multiplied gx-table: row v = embedding[v] @ wih1.T + folded gru1 bias.
    gx_table = (p["embedding"].astype(jnp.float32)
                @ p["wih1"].T.astype(jnp.float32) + gb1[None, :])

    # Pre-transposed (in, out) GRU weights that remain in-kernel, packed as bf16:
    # rows [0:128) = whh1.T, [128:256) = wih2.T, [256:384) = whh2.T.
    wgru = jnp.concatenate([p["whh1"].T, p["wih2"].T, p["whh2"].T],
                           axis=0).astype(jnp.bfloat16)

    biases = jnp.zeros((8, G), jnp.float32)
    biases = biases.at[0, 0:H1].set(bn1)
    biases = biases.at[1, :].set(gb2)          # 3*H2 == G
    biases = biases.at[2, 0:H2].set(bn2)
    biases = biases.at[3, 0:HL1].set(p["b1"])
    biases = biases.at[4, 0:NCLS].set(p["b2"])

    return {
        "gx_table": gx_table.astype(jnp.float32),
        "wgru": wgru,
        "w1t": p["w1"].T.astype(jnp.float32),
        "w2t": p["w2"].T.astype(jnp.float32),
        "biases": biases,
    }


def hier_encoder_forward(x_ids, y_ids, packed):
    Lx, Ly = int(x_ids.shape[0]), int(y_ids.shape[0])
    Lpad = max(Lx, Ly)
    x_pad = jnp.zeros((Lpad,), jnp.int32).at[:Lx].set(x_ids.astype(jnp.int32))
    y_pad = jnp.zeros((Lpad,), jnp.int32).at[:Ly].set(y_ids.astype(jnp.int32))

    smem = pl.BlockSpec(memory_space=pltpu.MemorySpace.SMEM)
    vmem = pl.BlockSpec(memory_space=pltpu.MemorySpace.VMEM)

    return pl.pallas_call(
        _make_kernel(Lx, Ly),
        out_shape=jax.ShapeDtypeStruct((1, NCLS), jnp.float32),
        in_specs=[smem, smem, vmem, vmem, vmem, vmem, vmem],
        out_specs=vmem,
    )(x_pad, y_pad, packed["gx_table"], packed["wgru"],
      packed["w1t"], packed["w2t"], packed["biases"])


# ---------------- pure-JAX reference (same math, f32, for verification) ------
def _ref_gru_step(x, h, wih, whh, bih, bhh, hid):
    gx = wih @ x + bih
    gh = whh @ h + bhh
    r = jax.nn.sigmoid(gx[:hid] + gh[:hid])
    z = jax.nn.sigmoid(gx[hid:2 * hid] + gh[hid:2 * hid])
    n = jnp.tanh(gx[2 * hid:] + r * gh[2 * hid:])
    return (1.0 - z) * n + z * h


def reference_forward(x_ids, y_ids, p):
    hx = jnp.zeros((H1,), jnp.float32)
    for i in range(x_ids.shape[0]):
        hx = _ref_gru_step(p["embedding"][x_ids[i]], hx,
                           p["wih1"], p["whh1"], p["bih1"], p["bhh1"], H1)
    hy = jnp.zeros((H1,), jnp.float32)
    for i in range(y_ids.shape[0]):
        hy = _ref_gru_step(p["embedding"][y_ids[i]], hy,
                           p["wih1"], p["whh1"], p["bih1"], p["bhh1"], H1)
    h2 = jnp.zeros((H2,), jnp.float32)
    h2 = _ref_gru_step(hx, h2, p["wih2"], p["whh2"], p["bih2"], p["bhh2"], H2)
    h2 = _ref_gru_step(hy, h2, p["wih2"], p["whh2"], p["bih2"], p["bhh2"], H2)
    o = jnp.maximum(p["w1"] @ h2 + p["b1"], 0.0)
    o = jnp.maximum(p["w2"] @ o + p["b2"], 0.0)[None, :]
    return jax.nn.log_softmax(o, axis=1)


# ---------------- deterministic parameter init --------------------------------
def init_params(key):
    ks = jax.random.split(key, 16)
    u = lambda k, shape, scale: jax.random.uniform(k, shape, jnp.float32, -scale, scale)
    s1 = 1.0 / jnp.sqrt(H1)
    s2 = 1.0 / jnp.sqrt(H2)
    return {
        "embedding": jax.random.normal(ks[0], (VOCAB, EMB), jnp.float32),
        # gru1: input EMB -> hidden H1 (gate order r, z, n like PyTorch)
        "wih1": u(ks[1], (3 * H1, EMB), s1), "whh1": u(ks[2], (3 * H1, H1), s1),
        "bih1": u(ks[3], (3 * H1,), s1),     "bhh1": u(ks[4], (3 * H1,), s1),
        # gru2: input EMB -> hidden 128
        "wih2": u(ks[5], (3 * H2, EMB), s2), "whh2": u(ks[6], (3 * H2, H2), s2),
        "bih2": u(ks[7], (3 * H2,), s2),     "bhh2": u(ks[8], (3 * H2,), s2),
        # linear1: 128 -> 32, linear2: 32 -> 2
        "w1": u(ks[9], (HL1, H2), 1.0 / jnp.sqrt(H2)), "b1": u(ks[10], (HL1,), 1.0 / jnp.sqrt(H2)),
        "w2": u(ks[11], (NCLS, HL1), 1.0 / jnp.sqrt(HL1)), "b2": u(ks[12], (NCLS,), 1.0 / jnp.sqrt(HL1)),
    }


if __name__ == "__main__":
    key = jax.random.PRNGKey(0)
    kp, kx, ky = jax.random.split(key, 3)
    params = init_params(kp)
    packed = pack_params(params)          # one-time transpose/fold/pack (incl. emb @ wih1)

    Lx, Ly = 8, 6
    x_ids = jax.random.randint(kx, (Lx,), 0, VOCAB, dtype=jnp.int32)
    y_ids = jax.random.randint(ky, (Ly,), 0, VOCAB, dtype=jnp.int32)

    out = hier_encoder_forward(x_ids, y_ids, packed)
    out = jax.block_until_ready(out)

    ref = reference_forward(x_ids, y_ids, params)
    assert out.shape == (1, NCLS)
    # bf16 MXU operands in the recurrence -> looser tolerance than pure-f32.
    assert jnp.allclose(out, ref, atol=5e-2, rtol=5e-2), (out, ref)
    print("KERNEL_OK")
</pallas_src>

<mosaic_0001>
module attributes {stable_mosaic.version = 11 : i64} {
  func.func @kernel(%arg0: memref<8xi32, #tpu.memory_space<smem>>, %arg1: memref<8xi32, #tpu.memory_space<smem>>, %arg2: memref<256x384xf32, #tpu.memory_space<vmem>>, %arg3: memref<384x384xbf16, #tpu.memory_space<vmem>>, %arg4: memref<128x32xf32, #tpu.memory_space<vmem>>, %arg5: memref<32x2xf32, #tpu.memory_space<vmem>>, %arg6: memref<8x384xf32, #tpu.memory_space<vmem>>, %arg7: memref<1x2xf32, #tpu.memory_space<vmem>>) attributes {dimension_semantics = [], scalar_prefetch = 0 : i64, scratch_operands = 0 : i64, tpu.core_type = #tpu.core_type<tc>} {
    %c0 = arith.constant 0 : index
    %c0_0 = arith.constant 0 : index
    %0 = vector.load %arg3[%c0, %c0_0] : memref<384x384xbf16, #tpu.memory_space<vmem>>, vector<128x384xbf16>
    %c0_1 = arith.constant 0 : index
    %c0_2 = arith.constant 0 : index
    %1 = vector.load %arg6[%c0_1, %c0_2] : memref<8x384xf32, #tpu.memory_space<vmem>>, vector<1x128xf32>
    %2 = tpu.concatenate %1, %1 in 0 : vector<1x128xf32>, vector<1x128xf32> -> vector<2x128xf32>
    %cst = arith.constant 0.000000e+00 : f32
    %3 = vector.broadcast %cst : f32 to vector<2x128xf32>
    %c0_3 = arith.constant 0 : index
    %4 = memref.load %arg0[%c0_3] : memref<8xi32, #tpu.memory_space<smem>>
    %5 = arith.index_cast %4 : i32 to index
    %c0_4 = arith.constant 0 : index
    %6 = vector.load %arg2[%5, %c0_4] : memref<256x384xf32, #tpu.memory_space<vmem>>, vector<1x384xf32>
    %c0_5 = arith.constant 0 : index
    %7 = memref.load %arg1[%c0_5] : memref<8xi32, #tpu.memory_space<smem>>
    %8 = arith.index_cast %7 : i32 to index
    %c0_6 = arith.constant 0 : index
    %9 = vector.load %arg2[%8, %c0_6] : memref<256x384xf32, #tpu.memory_space<vmem>>, vector<1x384xf32>
    %10 = tpu.concatenate %6, %9 in 0 : vector<1x384xf32>, vector<1x384xf32> -> vector<2x384xf32>
    %11 = arith.truncf %3 : vector<2x128xf32> to vector<2x128xbf16>
    %cst_7 = arith.constant dense<0.000000e+00> : vector<2x384xf32>
    %12 = tpu.matmul %11, %0, %cst_7 {dimension_numbers = #tpu.dot_dimension_numbers<[1], [0], [0], [1], [0, 0, 1, 1], [], []>} : vector<2x128xbf16>, vector<128x384xbf16>, vector<2x384xf32> -> vector<2x384xf32>
    %13 = vector.extract_strided_slice %10 {offsets = [0, 0], sizes = [2, 256], strides = [1, 1]} : vector<2x384xf32> to vector<2x256xf32>
    %14 = vector.extract_strided_slice %12 {offsets = [0, 0], sizes = [2, 256], strides = [1, 1]} : vector<2x384xf32> to vector<2x256xf32>
    %15 = arith.addf %13, %14 : vector<2x256xf32>
    %16 = arith.negf %15 : vector<2x256xf32>
    %17 = math.exp %16 : vector<2x256xf32>
    %cst_8 = arith.constant 1.000000e+00 : f32
    %18 = vector.broadcast %cst_8 : f32 to vector<2x256xf32>
    %19 = arith.addf %18, %17 : vector<2x256xf32>
    %20 = arith.divf %18, %19 : vector<2x256xf32>
    %21 = vector.extract_strided_slice %20 {offsets = [0, 0], sizes = [2, 128], strides = [1, 1]} : vector<2x256xf32> to vector<2x128xf32>
    %22 = vector.extract_strided_slice %20 {offsets = [0, 128], sizes = [2, 128], strides = [1, 1]} : vector<2x256xf32> to vector<2x128xf32>
    %23 = vector.extract_strided_slice %10 {offsets = [0, 256], sizes = [2, 128], strides = [1, 1]} : vector<2x384xf32> to vector<2x128xf32>
    %24 = vector.extract_strided_slice %12 {offsets = [0, 256], sizes = [2, 128], strides = [1, 1]} : vector<2x384xf32> to vector<2x128xf32>
    %25 = arith.addf %24, %2 : vector<2x128xf32>
    %26 = arith.mulf %21, %25 : vector<2x128xf32>
    %27 = arith.addf %23, %26 : vector<2x128xf32>
    %28 = math.tanh %27 : vector<2x128xf32>
    %cst_9 = arith.constant 1.000000e+00 : f32
    %29 = vector.broadcast %cst_9 : f32 to vector<2x128xf32>
    %30 = arith.subf %29, %22 : vector<2x128xf32>
    %31 = arith.mulf %30, %28 : vector<2x128xf32>
    %32 = arith.mulf %22, %3 : vector<2x128xf32>
    %33 = arith.addf %31, %32 : vector<2x128xf32>
    %c1 = arith.constant 1 : index
    %34 = memref.load %arg0[%c1] : memref<8xi32, #tpu.memory_space<smem>>
    %35 = arith.index_cast %34 : i32 to index
    %c0_10 = arith.constant 0 : index
    %36 = vector.load %arg2[%35, %c0_10] : memref<256x384xf32, #tpu.memory_space<vmem>>, vector<1x384xf32>
    %c1_11 = arith.constant 1 : index
    %37 = memref.load %arg1[%c1_11] : memref<8xi32, #tpu.memory_space<smem>>
    %38 = arith.index_cast %37 : i32 to index
    %c0_12 = arith.constant 0 : index
    %39 = vector.load %arg2[%38, %c0_12] : memref<256x384xf32, #tpu.memory_space<vmem>>, vector<1x384xf32>
    %40 = tpu.concatenate %36, %39 in 0 : vector<1x384xf32>, vector<1x384xf32> -> vector<2x384xf32>
    %41 = arith.truncf %33 : vector<2x128xf32> to vector<2x128xbf16>
    %cst_13 = arith.constant dense<0.000000e+00> : vector<2x384xf32>
    %42 = tpu.matmul %41, %0, %cst_13 {dimension_numbers = #tpu.dot_dimension_numbers<[1], [0], [0], [1], [0, 0, 1, 1], [], []>} : vector<2x128xbf16>, vector<128x384xbf16>, vector<2x384xf32> -> vector<2x384xf32>
    %43 = vector.extract_strided_slice %40 {offsets = [0, 0], sizes = [2, 256], strides = [1, 1]} : vector<2x384xf32> to vector<2x256xf32>
    %44 = vector.extract_strided_slice %42 {offsets = [0, 0], sizes = [2, 256], strides = [1, 1]} : vector<2x384xf32> to vector<2x256xf32>
    %45 = arith.addf %43, %44 : vector<2x256xf32>
    %46 = arith.negf %45 : vector<2x256xf32>
    %47 = math.exp %46 : vector<2x256xf32>
    %cst_14 = arith.constant 1.000000e+00 : f32
    %48 = vector.broadcast %cst_14 : f32 to vector<2x256xf32>
    %49 = arith.addf %48, %47 : vector<2x256xf32>
    %50 = arith.divf %48, %49 : vector<2x256xf32>
    %51 = vector.extract_strided_slice %50 {offsets = [0, 0], sizes = [2, 128], strides = [1, 1]} : vector<2x256xf32> to vector<2x128xf32>
    %52 = vector.extract_strided_slice %50 {offsets = [0, 128], sizes = [2, 128], strides = [1, 1]} : vector<2x256xf32> to vector<2x128xf32>
    %53 = vector.extract_strided_slice %40 {offsets = [0, 256], sizes = [2, 128], strides = [1, 1]} : vector<2x384xf32> to vector<2x128xf32>
    %54 = vector.extract_strided_slice %42 {offsets = [0, 256], sizes = [2, 128], strides = [1, 1]} : vector<2x384xf32> to vector<2x128xf32>
    %55 = arith.addf %54, %2 : vector<2x128xf32>
    %56 = arith.mulf %51, %55 : vector<2x128xf32>
    %57 = arith.addf %53, %56 : vector<2x128xf32>
    %58 = math.tanh %57 : vector<2x128xf32>
    %cst_15 = arith.constant 1.000000e+00 : f32
    %59 = vector.broadcast %cst_15 : f32 to vector<2x128xf32>
    %60 = arith.subf %59, %52 : vector<2x128xf32>
    %61 = arith.mulf %60, %58 : vector<2x128xf32>
    %62 = arith.mulf %52, %33 : vector<2x128xf32>
    %63 = arith.addf %61, %62 : vector<2x128xf32>
    %c2 = arith.constant 2 : index
    %64 = memref.load %arg0[%c2] : memref<8xi32, #tpu.memory_space<smem>>
    %65 = arith.index_cast %64 : i32 to index
    %c0_16 = arith.constant 0 : index
    %66 = vector.load %arg2[%65, %c0_16] : memref<256x384xf32, #tpu.memory_space<vmem>>, vector<1x384xf32>
    %c2_17 = arith.constant 2 : index
    %67 = memref.load %arg1[%c2_17] : memref<8xi32, #tpu.memory_space<smem>>
    %68 = arith.index_cast %67 : i32 to index
    %c0_18 = arith.constant 0 : index
    %69 = vector.load %arg2[%68, %c0_18] : memref<256x384xf32, #tpu.memory_space<vmem>>, vector<1x384xf32>
    %70 = tpu.concatenate %66, %69 in 0 : vector<1x384xf32>, vector<1x384xf32> -> vector<2x384xf32>
    %71 = arith.truncf %63 : vector<2x128xf32> to vector<2x128xbf16>
    %cst_19 = arith.constant dense<0.000000e+00> : vector<2x384xf32>
    %72 = tpu.matmul %71, %0, %cst_19 {dimension_numbers = #tpu.dot_dimension_numbers<[1], [0], [0], [1], [0, 0, 1, 1], [], []>} : vector<2x128xbf16>, vector<128x384xbf16>, vector<2x384xf32> -> vector<2x384xf32>
    %73 = vector.extract_strided_slice %70 {offsets = [0, 0], sizes = [2, 256], strides = [1, 1]} : vector<2x384xf32> to vector<2x256xf32>
    %74 = vector.extract_strided_slice %72 {offsets = [0, 0], sizes = [2, 256], strides = [1, 1]} : vector<2x384xf32> to vector<2x256xf32>
    %75 = arith.addf %73, %74 : vector<2x256xf32>
    %76 = arith.negf %75 : vector<2x256xf32>
    %77 = math.exp %76 : vector<2x256xf32>
    %cst_20 = arith.constant 1.000000e+00 : f32
    %78 = vector.broadcast %cst_20 : f32 to vector<2x256xf32>
    %79 = arith.addf %78, %77 : vector<2x256xf32>
    %80 = arith.divf %78, %79 : vector<2x256xf32>
    %81 = vector.extract_strided_slice %80 {offsets = [0, 0], sizes = [2, 128], strides = [1, 1]} : vector<2x256xf32> to vector<2x128xf32>
    %82 = vector.extract_strided_slice %80 {offsets = [0, 128], sizes = [2, 128], strides = [1, 1]} : vector<2x256xf32> to vector<2x128xf32>
    %83 = vector.extract_strided_slice %70 {offsets = [0, 256], sizes = [2, 128], strides = [1, 1]} : vector<2x384xf32> to vector<2x128xf32>
    %84 = vector.extract_strided_slice %72 {offsets = [0, 256], sizes = [2, 128], strides = [1, 1]} : vector<2x384xf32> to vector<2x128xf32>
    %85 = arith.addf %84, %2 : vector<2x128xf32>
    %86 = arith.mulf %81, %85 : vector<2x128xf32>
    %87 = arith.addf %83, %86 : vector<2x128xf32>
    %88 = math.tanh %87 : vector<2x128xf32>
    %cst_21 = arith.constant 1.000000e+00 : f32
    %89 = vector.broadcast %cst_21 : f32 to vector<2x128xf32>
    %90 = arith.subf %89, %82 : vector<2x128xf32>
    %91 = arith.mulf %90, %88 : vector<2x128xf32>
    %92 = arith.mulf %82, %63 : vector<2x128xf32>
    %93 = arith.addf %91, %92 : vector<2x128xf32>
    %c3 = arith.constant 3 : index
    %94 = memref.load %arg0[%c3] : memref<8xi32, #tpu.memory_space<smem>>
    %95 = arith.index_cast %94 : i32 to index
    %c0_22 = arith.constant 0 : index
    %96 = vector.load %arg2[%95, %c0_22] : memref<256x384xf32, #tpu.memory_space<vmem>>, vector<1x384xf32>
    %c3_23 = arith.constant 3 : index
    %97 = memref.load %arg1[%c3_23] : memref<8xi32, #tpu.memory_space<smem>>
    %98 = arith.index_cast %97 : i32 to index
    %c0_24 = arith.constant 0 : index
    %99 = vector.load %arg2[%98, %c0_24] : memref<256x384xf32, #tpu.memory_space<vmem>>, vector<1x384xf32>
    %100 = tpu.concatenate %96, %99 in 0 : vector<1x384xf32>, vector<1x384xf32> -> vector<2x384xf32>
    %101 = arith.truncf %93 : vector<2x128xf32> to vector<2x128xbf16>
    %cst_25 = arith.constant dense<0.000000e+00> : vector<2x384xf32>
    %102 = tpu.matmul %101, %0, %cst_25 {dimension_numbers = #tpu.dot_dimension_numbers<[1], [0], [0], [1], [0, 0, 1, 1], [], []>} : vector<2x128xbf16>, vector<128x384xbf16>, vector<2x384xf32> -> vector<2x384xf32>
    %103 = vector.extract_strided_slice %100 {offsets = [0, 0], sizes = [2, 256], strides = [1, 1]} : vector<2x384xf32> to vector<2x256xf32>
    %104 = vector.extract_strided_slice %102 {offsets = [0, 0], sizes = [2, 256], strides = [1, 1]} : vector<2x384xf32> to vector<2x256xf32>
    %105 = arith.addf %103, %104 : vector<2x256xf32>
    %106 = arith.negf %105 : vector<2x256xf32>
    %107 = math.exp %106 : vector<2x256xf32>
    %cst_26 = arith.constant 1.000000e+00 : f32
    %108 = vector.broadcast %cst_26 : f32 to vector<2x256xf32>
    %109 = arith.addf %108, %107 : vector<2x256xf32>
    %110 = arith.divf %108, %109 : vector<2x256xf32>
    %111 = vector.extract_strided_slice %110 {offsets = [0, 0], sizes = [2, 128], strides = [1, 1]} : vector<2x256xf32> to vector<2x128xf32>
    %112 = vector.extract_strided_slice %110 {offsets = [0, 128], sizes = [2, 128], strides = [1, 1]} : vector<2x256xf32> to vector<2x128xf32>
    %113 = vector.extract_strided_slice %100 {offsets = [0, 256], sizes = [2, 128], strides = [1, 1]} : vector<2x384xf32> to vector<2x128xf32>
    %114 = vector.extract_strided_slice %102 {offsets = [0, 256], sizes = [2, 128], strides = [1, 1]} : vector<2x384xf32> to vector<2x128xf32>
    %115 = arith.addf %114, %2 : vector<2x128xf32>
    %116 = arith.mulf %111, %115 : vector<2x128xf32>
    %117 = arith.addf %113, %116 : vector<2x128xf32>
    %118 = math.tanh %117 : vector<2x128xf32>
    %cst_27 = arith.constant 1.000000e+00 : f32
    %119 = vector.broadcast %cst_27 : f32 to vector<2x128xf32>
    %120 = arith.subf %119, %112 : vector<2x128xf32>
    %121 = arith.mulf %120, %118 : vector<2x128xf32>
    %122 = arith.mulf %112, %93 : vector<2x128xf32>
    %123 = arith.addf %121, %122 : vector<2x128xf32>
    %c4 = arith.constant 4 : index
    %124 = memref.load %arg0[%c4] : memref<8xi32, #tpu.memory_space<smem>>
    %125 = arith.index_cast %124 : i32 to index
    %c0_28 = arith.constant 0 : index
    %126 = vector.load %arg2[%125, %c0_28] : memref<256x384xf32, #tpu.memory_space<vmem>>, vector<1x384xf32>
    %c4_29 = arith.constant 4 : index
    %127 = memref.load %arg1[%c4_29] : memref<8xi32, #tpu.memory_space<smem>>
    %128 = arith.index_cast %127 : i32 to index
    %c0_30 = arith.constant 0 : index
    %129 = vector.load %arg2[%128, %c0_30] : memref<256x384xf32, #tpu.memory_space<vmem>>, vector<1x384xf32>
    %130 = tpu.concatenate %126, %129 in 0 : vector<1x384xf32>, vector<1x384xf32> -> vector<2x384xf32>
    %131 = arith.truncf %123 : vector<2x128xf32> to vector<2x128xbf16>
    %cst_31 = arith.constant dense<0.000000e+00> : vector<2x384xf32>
    %132 = tpu.matmul %131, %0, %cst_31 {dimension_numbers = #tpu.dot_dimension_numbers<[1], [0], [0], [1], [0, 0, 1, 1], [], []>} : vector<2x128xbf16>, vector<128x384xbf16>, vector<2x384xf32> -> vector<2x384xf32>
    %133 = vector.extract_strided_slice %130 {offsets = [0, 0], sizes = [2, 256], strides = [1, 1]} : vector<2x384xf32> to vector<2x256xf32>
    %134 = vector.extract_strided_slice %132 {offsets = [0, 0], sizes = [2, 256], strides = [1, 1]} : vector<2x384xf32> to vector<2x256xf32>
    %135 = arith.addf %133, %134 : vector<2x256xf32>
    %136 = arith.negf %135 : vector<2x256xf32>
    %137 = math.exp %136 : vector<2x256xf32>
    %cst_32 = arith.constant 1.000000e+00 : f32
    %138 = vector.broadcast %cst_32 : f32 to vector<2x256xf32>
    %139 = arith.addf %138, %137 : vector<2x256xf32>
    %140 = arith.divf %138, %139 : vector<2x256xf32>
    %141 = vector.extract_strided_slice %140 {offsets = [0, 0], sizes = [2, 128], strides = [1, 1]} : vector<2x256xf32> to vector<2x128xf32>
    %142 = vector.extract_strided_slice %140 {offsets = [0, 128], sizes = [2, 128], strides = [1, 1]} : vector<2x256xf32> to vector<2x128xf32>
    %143 = vector.extract_strided_slice %130 {offsets = [0, 256], sizes = [2, 128], strides = [1, 1]} : vector<2x384xf32> to vector<2x128xf32>
    %144 = vector.extract_strided_slice %132 {offsets = [0, 256], sizes = [2, 128], strides = [1, 1]} : vector<2x384xf32> to vector<2x128xf32>
    %145 = arith.addf %144, %2 : vector<2x128xf32>
    %146 = arith.mulf %141, %145 : vector<2x128xf32>
    %147 = arith.addf %143, %146 : vector<2x128xf32>
    %148 = math.tanh %147 : vector<2x128xf32>
    %cst_33 = arith.constant 1.000000e+00 : f32
    %149 = vector.broadcast %cst_33 : f32 to vector<2x128xf32>
    %150 = arith.subf %149, %142 : vector<2x128xf32>
    %151 = arith.mulf %150, %148 : vector<2x128xf32>
    %152 = arith.mulf %142, %123 : vector<2x128xf32>
    %153 = arith.addf %151, %152 : vector<2x128xf32>
    %c5 = arith.constant 5 : index
    %154 = memref.load %arg0[%c5] : memref<8xi32, #tpu.memory_space<smem>>
    %155 = arith.index_cast %154 : i32 to index
    %c0_34 = arith.constant 0 : index
    %156 = vector.load %arg2[%155, %c0_34] : memref<256x384xf32, #tpu.memory_space<vmem>>, vector<1x384xf32>
    %c5_35 = arith.constant 5 : index
    %157 = memref.load %arg1[%c5_35] : memref<8xi32, #tpu.memory_space<smem>>
    %158 = arith.index_cast %157 : i32 to index
    %c0_36 = arith.constant 0 : index
    %159 = vector.load %arg2[%158, %c0_36] : memref<256x384xf32, #tpu.memory_space<vmem>>, vector<1x384xf32>
    %160 = tpu.concatenate %156, %159 in 0 : vector<1x384xf32>, vector<1x384xf32> -> vector<2x384xf32>
    %161 = arith.truncf %153 : vector<2x128xf32> to vector<2x128xbf16>
    %cst_37 = arith.constant dense<0.000000e+00> : vector<2x384xf32>
    %162 = tpu.matmul %161, %0, %cst_37 {dimension_numbers = #tpu.dot_dimension_numbers<[1], [0], [0], [1], [0, 0, 1, 1], [], []>} : vector<2x128xbf16>, vector<128x384xbf16>, vector<2x384xf32> -> vector<2x384xf32>
    %163 = vector.extract_strided_slice %160 {offsets = [0, 0], sizes = [2, 256], strides = [1, 1]} : vector<2x384xf32> to vector<2x256xf32>
    %164 = vector.extract_strided_slice %162 {offsets = [0, 0], sizes = [2, 256], strides = [1, 1]} : vector<2x384xf32> to vector<2x256xf32>
    %165 = arith.addf %163, %164 : vector<2x256xf32>
    %166 = arith.negf %165 : vector<2x256xf32>
    %167 = math.exp %166 : vector<2x256xf32>
    %cst_38 = arith.constant 1.000000e+00 : f32
    %168 = vector.broadcast %cst_38 : f32 to vector<2x256xf32>
    %169 = arith.addf %168, %167 : vector<2x256xf32>
    %170 = arith.divf %168, %169 : vector<2x256xf32>
    %171 = vector.extract_strided_slice %170 {offsets = [0, 0], sizes = [2, 128], strides = [1, 1]} : vector<2x256xf32> to vector<2x128xf32>
    %172 = vector.extract_strided_slice %170 {offsets = [0, 128], sizes = [2, 128], strides = [1, 1]} : vector<2x256xf32> to vector<2x128xf32>
    %173 = vector.extract_strided_slice %160 {offsets = [0, 256], sizes = [2, 128], strides = [1, 1]} : vector<2x384xf32> to vector<2x128xf32>
    %174 = vector.extract_strided_slice %162 {offsets = [0, 256], sizes = [2, 128], strides = [1, 1]} : vector<2x384xf32> to vector<2x128xf32>
    %175 = arith.addf %174, %2 : vector<2x128xf32>
    %176 = arith.mulf %171, %175 : vector<2x128xf32>
    %177 = arith.addf %173, %176 : vector<2x128xf32>
    %178 = math.tanh %177 : vector<2x128xf32>
    %cst_39 = arith.constant 1.000000e+00 : f32
    %179 = vector.broadcast %cst_39 : f32 to vector<2x128xf32>
    %180 = arith.subf %179, %172 : vector<2x128xf32>
    %181 = arith.mulf %180, %178 : vector<2x128xf32>
    %182 = arith.mulf %172, %153 : vector<2x128xf32>
    %183 = arith.addf %181, %182 : vector<2x128xf32>
    %184 = vector.extract_strided_slice %183 {offsets = [0, 0], sizes = [1, 128], strides = [1, 1]} : vector<2x128xf32> to vector<1x128xf32>
    %c6 = arith.constant 6 : index
    %185 = memref.load %arg0[%c6] : memref<8xi32, #tpu.memory_space<smem>>
    %186 = arith.index_cast %185 : i32 to index
    %c0_40 = arith.constant 0 : index
    %187 = vector.load %arg2[%186, %c0_40] : memref<256x384xf32, #tpu.memory_space<vmem>>, vector<1x384xf32>
    %188 = arith.truncf %184 : vector<1x128xf32> to vector<1x128xbf16>
    %cst_41 = arith.constant dense<0.000000e+00> : vector<1x384xf32>
    %189 = tpu.matmul %188, %0, %cst_41 {dimension_numbers = #tpu.dot_dimension_numbers<[1], [0], [0], [1], [0, 0, 1, 1], [], []>} : vector<1x128xbf16>, vector<128x384xbf16>, vector<1x384xf32> -> vector<1x384xf32>
    %190 = vector.extract_strided_slice %187 {offsets = [0, 0], sizes = [1, 256], strides = [1, 1]} : vector<1x384xf32> to vector<1x256xf32>
    %191 = vector.extract_strided_slice %189 {offsets = [0, 0], sizes = [1, 256], strides = [1, 1]} : vector<1x384xf32> to vector<1x256xf32>
    %192 = arith.addf %190, %191 : vector<1x256xf32>
    %193 = arith.negf %192 : vector<1x256xf32>
    %194 = math.exp %193 : vector<1x256xf32>
    %cst_42 = arith.constant 1.000000e+00 : f32
    %195 = vector.broadcast %cst_42 : f32 to vector<1x256xf32>
    %196 = arith.addf %195, %194 : vector<1x256xf32>
    %197 = arith.divf %195, %196 : vector<1x256xf32>
    %198 = vector.extract_strided_slice %197 {offsets = [0, 0], sizes = [1, 128], strides = [1, 1]} : vector<1x256xf32> to vector<1x128xf32>
    %199 = vector.extract_strided_slice %197 {offsets = [0, 128], sizes = [1, 128], strides = [1, 1]} : vector<1x256xf32> to vector<1x128xf32>
    %200 = vector.extract_strided_slice %187 {offsets = [0, 256], sizes = [1, 128], strides = [1, 1]} : vector<1x384xf32> to vector<1x128xf32>
    %201 = vector.extract_strided_slice %189 {offsets = [0, 256], sizes = [1, 128], strides = [1, 1]} : vector<1x384xf32> to vector<1x128xf32>
    %202 = arith.addf %201, %1 : vector<1x128xf32>
    %203 = arith.mulf %198, %202 : vector<1x128xf32>
    %204 = arith.addf %200, %203 : vector<1x128xf32>
    %205 = math.tanh %204 : vector<1x128xf32>
    %cst_43 = arith.constant 1.000000e+00 : f32
    %206 = vector.broadcast %cst_43 : f32 to vector<1x128xf32>
    %207 = arith.subf %206, %199 : vector<1x128xf32>
    %208 = arith.mulf %207, %205 : vector<1x128xf32>
    %209 = arith.mulf %199, %184 : vector<1x128xf32>
    %210 = arith.addf %208, %209 : vector<1x128xf32>
    %c7 = arith.constant 7 : index
    %211 = memref.load %arg0[%c7] : memref<8xi32, #tpu.memory_space<smem>>
    %212 = arith.index_cast %211 : i32 to index
    %c0_44 = arith.constant 0 : index
    %213 = vector.load %arg2[%212, %c0_44] : memref<256x384xf32, #tpu.memory_space<vmem>>, vector<1x384xf32>
    %214 = arith.truncf %210 : vector<1x128xf32> to vector<1x128xbf16>
    %cst_45 = arith.constant dense<0.000000e+00> : vector<1x384xf32>
    %215 = tpu.matmul %214, %0, %cst_45 {dimension_numbers = #tpu.dot_dimension_numbers<[1], [0], [0], [1], [0, 0, 1, 1], [], []>} : vector<1x128xbf16>, vector<128x384xbf16>, vector<1x384xf32> -> vector<1x384xf32>
    %216 = vector.extract_strided_slice %213 {offsets = [0, 0], sizes = [1, 256], strides = [1, 1]} : vector<1x384xf32> to vector<1x256xf32>
    %217 = vector.extract_strided_slice %215 {offsets = [0, 0], sizes = [1, 256], strides = [1, 1]} : vector<1x384xf32> to vector<1x256xf32>
    %218 = arith.addf %216, %217 : vector<1x256xf32>
    %219 = arith.negf %218 : vector<1x256xf32>
    %220 = math.exp %219 : vector<1x256xf32>
    %cst_46 = arith.constant 1.000000e+00 : f32
    %221 = vector.broadcast %cst_46 : f32 to vector<1x256xf32>
    %222 = arith.addf %221, %220 : vector<1x256xf32>
    %223 = arith.divf %221, %222 : vector<1x256xf32>
    %224 = vector.extract_strided_slice %223 {offsets = [0, 0], sizes = [1, 128], strides = [1, 1]} : vector<1x256xf32> to vector<1x128xf32>
    %225 = vector.extract_strided_slice %223 {offsets = [0, 128], sizes = [1, 128], strides = [1, 1]} : vector<1x256xf32> to vector<1x128xf32>
    %226 = vector.extract_strided_slice %213 {offsets = [0, 256], sizes = [1, 128], strides = [1, 1]} : vector<1x384xf32> to vector<1x128xf32>
    %227 = vector.extract_strided_slice %215 {offsets = [0, 256], sizes = [1, 128], strides = [1, 1]} : vector<1x384xf32> to vector<1x128xf32>
    %228 = arith.addf %227, %1 : vector<1x128xf32>
    %229 = arith.mulf %224, %228 : vector<1x128xf32>
    %230 = arith.addf %226, %229 : vector<1x128xf32>
    %231 = math.tanh %230 : vector<1x128xf32>
    %cst_47 = arith.constant 1.000000e+00 : f32
    %232 = vector.broadcast %cst_47 : f32 to vector<1x128xf32>
    %233 = arith.subf %232, %225 : vector<1x128xf32>
    %234 = arith.mulf %233, %231 : vector<1x128xf32>
    %235 = arith.mulf %225, %210 : vector<1x128xf32>
    %236 = arith.addf %234, %235 : vector<1x128xf32>
    %237 = vector.extract_strided_slice %183 {offsets = [1, 0], sizes = [1, 128], strides = [1, 1]} : vector<2x128xf32> to vector<1x128xf32>
    %238 = tpu.concatenate %236, %237 in 0 : vector<1x128xf32>, vector<1x128xf32> -> vector<2x128xf32>
    %c128 = arith.constant 128 : index
    %c0_48 = arith.constant 0 : index
    %239 = vector.load %arg3[%c128, %c0_48] : memref<384x384xbf16, #tpu.memory_space<vmem>>, vector<128x384xbf16>
    %c256 = arith.constant 256 : index
    %c0_49 = arith.constant 0 : index
    %240 = vector.load %arg3[%c256, %c0_49] : memref<384x384xbf16, #tpu.memory_space<vmem>>, vector<128x384xbf16>
    %c1_50 = arith.constant 1 : index
    %c0_51 = arith.constant 0 : index
    %241 = vector.load %arg6[%c1_50, %c0_51] : memref<8x384xf32, #tpu.memory_space<vmem>>, vector<1x384xf32>
    %c2_52 = arith.constant 2 : index
    %c0_53 = arith.constant 0 : index
    %242 = vector.load %arg6[%c2_52, %c0_53] : memref<8x384xf32, #tpu.memory_space<vmem>>, vector<1x128xf32>
    %243 = arith.truncf %238 : vector<2x128xf32> to vector<2x128xbf16>
    %cst_54 = arith.constant dense<0.000000e+00> : vector<2x384xf32>
    %244 = tpu.matmul %243, %239, %cst_54 {dimension_numbers = #tpu.dot_dimension_numbers<[1], [0], [0], [1], [0, 0, 1, 1], [], []>} : vector<2x128xbf16>, vector<128x384xbf16>, vector<2x384xf32> -> vector<2x384xf32>
    %245 = vector.broadcast %241 : vector<1x384xf32> to vector<2x384xf32>
    %246 = arith.addf %244, %245 : vector<2x384xf32>
    %cst_55 = arith.constant 0.000000e+00 : f32
    %247 = vector.broadcast %cst_55 : f32 to vector<1x128xf32>
    %248 = vector.extract_strided_slice %246 {offsets = [0, 0], sizes = [1, 384], strides = [1, 1]} : vector<2x384xf32> to vector<1x384xf32>
    %249 = arith.truncf %247 : vector<1x128xf32> to vector<1x128xbf16>
    %cst_56 = arith.constant dense<0.000000e+00> : vector<1x384xf32>
    %250 = tpu.matmul %249, %240, %cst_56 {dimension_numbers = #tpu.dot_dimension_numbers<[1], [0], [0], [1], [0, 0, 1, 1], [], []>} : vector<1x128xbf16>, vector<128x384xbf16>, vector<1x384xf32> -> vector<1x384xf32>
    %251 = vector.extract_strided_slice %248 {offsets = [0, 0], sizes = [1, 256], strides = [1, 1]} : vector<1x384xf32> to vector<1x256xf32>
    %252 = vector.extract_strided_slice %250 {offsets = [0, 0], sizes = [1, 256], strides = [1, 1]} : vector<1x384xf32> to vector<1x256xf32>
    %253 = arith.addf %251, %252 : vector<1x256xf32>
    %254 = arith.negf %253 : vector<1x256xf32>
    %255 = math.exp %254 : vector<1x256xf32>
    %cst_57 = arith.constant 1.000000e+00 : f32
    %256 = vector.broadcast %cst_57 : f32 to vector<1x256xf32>
    %257 = arith.addf %256, %255 : vector<1x256xf32>
    %258 = arith.divf %256, %257 : vector<1x256xf32>
    %259 = vector.extract_strided_slice %258 {offsets = [0, 0], sizes = [1, 128], strides = [1, 1]} : vector<1x256xf32> to vector<1x128xf32>
    %260 = vector.extract_strided_slice %258 {offsets = [0, 128], sizes = [1, 128], strides = [1, 1]} : vector<1x256xf32> to vector<1x128xf32>
    %261 = vector.extract_strided_slice %248 {offsets = [0, 256], sizes = [1, 128], strides = [1, 1]} : vector<1x384xf32> to vector<1x128xf32>
    %262 = vector.extract_strided_slice %250 {offsets = [0, 256], sizes = [1, 128], strides = [1, 1]} : vector<1x384xf32> to vector<1x128xf32>
    %263 = arith.addf %262, %242 : vector<1x128xf32>
    %264 = arith.mulf %259, %263 : vector<1x128xf32>
    %265 = arith.addf %261, %264 : vector<1x128xf32>
    %266 = math.tanh %265 : vector<1x128xf32>
    %cst_58 = arith.constant 1.000000e+00 : f32
    %267 = vector.broadcast %cst_58 : f32 to vector<1x128xf32>
    %268 = arith.subf %267, %260 : vector<1x128xf32>
    %269 = arith.mulf %268, %266 : vector<1x128xf32>
    %270 = arith.mulf %260, %247 : vector<1x128xf32>
    %271 = arith.addf %269, %270 : vector<1x128xf32>
    %272 = vector.extract_strided_slice %246 {offsets = [1, 0], sizes = [1, 384], strides = [1, 1]} : vector<2x384xf32> to vector<1x384xf32>
    %273 = arith.truncf %271 : vector<1x128xf32> to vector<1x128xbf16>
    %cst_59 = arith.constant dense<0.000000e+00> : vector<1x384xf32>
    %274 = tpu.matmul %273, %240, %cst_59 {dimension_numbers = #tpu.dot_dimension_numbers<[1], [0], [0], [1], [0, 0, 1, 1], [], []>} : vector<1x128xbf16>, vector<128x384xbf16>, vector<1x384xf32> -> vector<1x384xf32>
    %275 = vector.extract_strided_slice %272 {offsets = [0, 0], sizes = [1, 256], strides = [1, 1]} : vector<1x384xf32> to vector<1x256xf32>
    %276 = vector.extract_strided_slice %274 {offsets = [0, 0], sizes = [1, 256], strides = [1, 1]} : vector<1x384xf32> to vector<1x256xf32>
    %277 = arith.addf %275, %276 : vector<1x256xf32>
    %278 = arith.negf %277 : vector<1x256xf32>
    %279 = math.exp %278 : vector<1x256xf32>
    %cst_60 = arith.constant 1.000000e+00 : f32
    %280 = vector.broadcast %cst_60 : f32 to vector<1x256xf32>
    %281 = arith.addf %280, %279 : vector<1x256xf32>
    %282 = arith.divf %280, %281 : vector<1x256xf32>
    %283 = vector.extract_strided_slice %282 {offsets = [0, 0], sizes = [1, 128], strides = [1, 1]} : vector<1x256xf32> to vector<1x128xf32>
    %284 = vector.extract_strided_slice %282 {offsets = [0, 128], sizes = [1, 128], strides = [1, 1]} : vector<1x256xf32> to vector<1x128xf32>
    %285 = vector.extract_strided_slice %272 {offsets = [0, 256], sizes = [1, 128], strides = [1, 1]} : vector<1x384xf32> to vector<1x128xf32>
    %286 = vector.extract_strided_slice %274 {offsets = [0, 256], sizes = [1, 128], strides = [1, 1]} : vector<1x384xf32> to vector<1x128xf32>
    %287 = arith.addf %286, %242 : vector<1x128xf32>
    %288 = arith.mulf %283, %287 : vector<1x128xf32>
    %289 = arith.addf %285, %288 : vector<1x128xf32>
    %290 = math.tanh %289 : vector<1x128xf32>
    %cst_61 = arith.constant 1.000000e+00 : f32
    %291 = vector.broadcast %cst_61 : f32 to vector<1x128xf32>
    %292 = arith.subf %291, %284 : vector<1x128xf32>
    %293 = arith.mulf %292, %290 : vector<1x128xf32>
    %294 = arith.mulf %284, %271 : vector<1x128xf32>
    %295 = arith.addf %293, %294 : vector<1x128xf32>
    %c3_62 = arith.constant 3 : index
    %c0_63 = arith.constant 0 : index
    %296 = vector.load %arg6[%c3_62, %c0_63] : memref<8x384xf32, #tpu.memory_space<vmem>>, vector<1x32xf32>
    %c4_64 = arith.constant 4 : index
    %c0_65 = arith.constant 0 : index
    %297 = vector.load %arg6[%c4_64, %c0_65] : memref<8x384xf32, #tpu.memory_space<vmem>>, vector<1x2xf32>
    %c0_66 = arith.constant 0 : index
    %c0_67 = arith.constant 0 : index
    %298 = vector.load %arg4[%c0_66, %c0_67] : memref<128x32xf32, #tpu.memory_space<vmem>>, vector<128x32xf32>
    %cst_68 = arith.constant dense<0.000000e+00> : vector<1x32xf32>
    %299 = tpu.matmul %295, %298, %cst_68 {dimension_numbers = #tpu.dot_dimension_numbers<[1], [0], [0], [1], [0, 0, 1, 1], [], []>} : vector<1x128xf32>, vector<128x32xf32>, vector<1x32xf32> -> vector<1x32xf32>
    %300 = arith.addf %299, %296 : vector<1x32xf32>
    %cst_69 = arith.constant 0.000000e+00 : f32
    %301 = vector.broadcast %cst_69 : f32 to vector<1x32xf32>
    %302 = arith.maximumf %300, %301 : vector<1x32xf32>
    %c0_70 = arith.constant 0 : index
    %c0_71 = arith.constant 0 : index
    %303 = vector.load %arg5[%c0_70, %c0_71] : memref<32x2xf32, #tpu.memory_space<vmem>>, vector<32x2xf32>
    %cst_72 = arith.constant dense<0.000000e+00> : vector<1x2xf32>
    %304 = tpu.matmul %302, %303, %cst_72 {dimension_numbers = #tpu.dot_dimension_numbers<[1], [0], [0], [1], [0, 0, 1, 1], [], []>} : vector<1x32xf32>, vector<32x2xf32>, vector<1x2xf32> -> vector<1x2xf32>
    %305 = arith.addf %304, %297 : vector<1x2xf32>
    %cst_73 = arith.constant 0.000000e+00 : f32
    %306 = vector.broadcast %cst_73 : f32 to vector<1x2xf32>
    %307 = arith.maximumf %305, %306 : vector<1x2xf32>
    %cst_74 = arith.constant dense<0xFF800000> : vector<1xf32>
    %308 = vector.multi_reduction <maximumf>, %307, %cst_74 [1] : vector<1x2xf32> to vector<1xf32>
    %309 = vector.shape_cast %308 : vector<1xf32> to vector<1x1xf32>
    %310 = vector.broadcast %309 : vector<1x1xf32> to vector<1x2xf32>
    %311 = arith.subf %307, %310 : vector<1x2xf32>
    %312 = math.exp %311 : vector<1x2xf32>
    %cst_75 = arith.constant dense<0.000000e+00> : vector<1xf32>
    %313 = vector.multi_reduction <add>, %312, %cst_75 [1] : vector<1x2xf32> to vector<1xf32>
    %314 = vector.shape_cast %313 : vector<1xf32> to vector<1x1xf32>
    %315 = math.log %314 : vector<1x1xf32>
    %316 = vector.broadcast %315 : vector<1x1xf32> to vector<1x2xf32>
    %317 = arith.subf %311, %316 : vector<1x2xf32>
    %c0_76 = arith.constant 0 : index
    %c0_77 = arith.constant 0 : index
    %318 = vector.load %arg7[%c0_76, %c0_77] : memref<1x2xf32, #tpu.memory_space<vmem>>, vector<1x2xf32>
    tpu.vector_store %arg7[%c0_76, %c0_77], %317 {strides = array<i32>} : memref<1x2xf32, #tpu.memory_space<vmem>>, vector<1x2xf32>,
    return
  }
}

</mosaic_0001>

<llo_original>
// kernel: tpu_custom_call.1
$region0: #{tpu_custom_call.1}
  #allocation0 [shape = 'u32[]', space=smem, size = 0x4, offset = 0x4, fixed_abs, tag = 'smem constant byte address 0x4 - core index']
  #allocation1 [shape = 'u32[144,128]{1,0:T(1,128)}', space=vmem, size = 0x12000, scoped, tag = 'internal scratch']
  %s0 = inlined_call_operand.vmem [shape: s32[8], index: 0, kind: input, shape index: {}]
  %s1 = inlined_call_operand.vmem [shape: s32[8], index: 1, kind: input, shape index: {}]
  %s2 = inlined_call_operand.hbm [shape: f32[256,384], index: 2, kind: input, shape index: {}]
  %s3 = inlined_call_operand.hbm [shape: bf16[384,384], index: 3, kind: input, shape index: {}]
  %s4 = inlined_call_operand.vmem [shape: f32[128,32], index: 4, kind: input, shape index: {}]
  %s5 = inlined_call_operand.vmem [shape: f32[32,2], index: 5, kind: input, shape index: {}]
  %s6 = inlined_call_operand.vmem [shape: f32[8,384], index: 6, kind: input, shape index: {}]
  %s7 = inlined_call_operand.hbm [shape: f32[1,2], index: 7, kind: output, shape index: {}]
  %s8 = sld [smem:[#allocation0]]
  $region54: #{tpu_custom_call.1} parent=0
    _
  %s10 = ssub.s32 1, %s8
  %s11 = scalar_select 0, %s10, %s8
  $region1: #{tpu_custom_call.1} parent=0
    #allocation2 [shape = 'u8[512]{0}', space=smem, size = 0x200, scoped, tag = 'input window, operand 0, single buffered']
    #allocation3 [shape = 's32[1]{0}', space=sflag, size = 0x4, scoped, tag = 'scoped memory for tpu_custom_call.1']
    #allocation4 [shape = 's32[1]{0}', space=sflag, size = 0x4, scoped, tag = 'scoped memory for tpu_custom_call.1']
    #allocation5 [shape = 's32[1]{0}', space=sflag, size = 0x4, scoped, tag = 'scoped memory for tpu_custom_call.1']
    #allocation6 [shape = 'u8[512]{0}', space=smem, size = 0x200, scoped, tag = 'input window, operand 1, single buffered']
    #allocation7 [shape = 's32[1]{0}', space=sflag, size = 0x4, scoped, tag = 'scoped memory for tpu_custom_call.1']
    #allocation8 [shape = 'u8[393216]{0}', space=vmem, size = 0x60000, scoped, tag = 'input window, operand 2, single buffered']
    #allocation9 [shape = 'u8[294912]{0}', space=vmem, size = 0x48000, scoped, tag = 'input window, operand 3, single buffered']
    #allocation10 [shape = 's32[1]{0}', space=sflag, size = 0x4, scoped, tag = 'scoped memory for tpu_custom_call.1']
    #allocation11 [shape = 'u8[512]{0}', space=vmem, size = 0x400, scoped, tag = 'output window, operand 0, single buffered']
    %12 = vsyncpa [#allocation5], 0
    %13 = vsyncpa [#allocation7], 0
    %14 = vsyncpa [#allocation3], 0
    %15 = vsyncpa [#allocation10], 0
    %16 = vsyncpa [#allocation4], 0
    // Predicated region
    $region2: #{tpu_custom_call.1} parent=1 // pred_check
      _
    $region3: #{tpu_custom_call.1} parent=1 // pred_check_branch
      %18 = sbr.rel (0) target = $region5
    $region4: #{tpu_custom_call.1} parent=1 // pred_region
      %s20 = ssub.s32 16, 16
      %21 = vsyncadd [#allocation5], %s20
      %s23 = sshll.u32 %s0, 4
      %s24 = int_to_ptr.vmem [resolvable:$true] %s23
      %26 = dma.vmem_to_smem %s24, 16, [#allocation2], [#allocation5]
    $region5: #{tpu_custom_call.1} parent=1 // pred_fallthru
      _
    // Predicated region
    $region6: #{tpu_custom_call.1} parent=1 // pred_check
      _
    $region7: #{tpu_custom_call.1} parent=1 // pred_check_branch
      %28 = sbr.rel (0) target = $region9
    $region8: #{tpu_custom_call.1} parent=1 // pred_region
      %s30 = ssub.s32 16, 16
      %31 = vsyncadd [#allocation7], %s30
      %s33 = sshll.u32 %s1, 4
      %s34 = int_to_ptr.vmem [resolvable:$true] %s33
      %36 = dma.vmem_to_smem %s34, 16, [#allocation6], [#allocation7]
    $region9: #{tpu_custom_call.1} parent=1 // pred_fallthru
      _
    // Predicated region
    $region10: #{tpu_custom_call.1} parent=1 // pred_check
      _
    $region11: #{tpu_custom_call.1} parent=1 // pred_check_branch
      %38 = sbr.rel (0) target = $region13
    $region12: #{tpu_custom_call.1} parent=1 // pred_region
      %s40 = ssub.s32 12288, 12288
      %41 = vsyncadd [#allocation3], %s40
      %s42 = sshll.u32 [#allocation8], 4
      %s43 = int_to_ptr.vmem [resolvable:$true] %s42
      %48 = dma.hbm_to_vmem [thread:$0]  %s2, 12288, %s43, [#allocation3], 384, 384, 24
    $region13: #{tpu_custom_call.1} parent=1 // pred_fallthru
      _
    // Predicated region
    $region14: #{tpu_custom_call.1} parent=1 // pred_check
      _
    $region15: #{tpu_custom_call.1} parent=1 // pred_check_branch
      %50 = sbr.rel (0) target = $region17
    $region16: #{tpu_custom_call.1} parent=1 // pred_region
      %s52 = ssub.s32 9216, 9216
      %53 = vsyncadd [#allocation10], %s52
      %s54 = sshll.u32 [#allocation9], 4
      %s55 = int_to_ptr.vmem [resolvable:$true] %s54
      %60 = dma.hbm_to_vmem [thread:$0]  %s3, 9216, %s55, [#allocation10], 192, 192, 12
    $region17: #{tpu_custom_call.1} parent=1 // pred_fallthru
      _
    // Predicated region
    $region18: #{tpu_custom_call.1} parent=1 // pred_check
      _
    $region19: #{tpu_custom_call.1} parent=1 // pred_check_branch
      %62 = sbr.rel (0) target = $region21
    $region20: #{tpu_custom_call.1} parent=1 // pred_region
      _
    $region21: #{tpu_custom_call.1} parent=1 // pred_fallthru
      _
    // Predicated region
    $region22: #{tpu_custom_call.1} parent=1 // pred_check
      _
    $region23: #{tpu_custom_call.1} parent=1 // pred_check_branch
      %64 = sbr.rel (0) target = $region25
    $region24: #{tpu_custom_call.1} parent=1 // pred_region
      _
    $region25: #{tpu_custom_call.1} parent=1 // pred_fallthru
      _
    // Predicated region
    $region26: #{tpu_custom_call.1} parent=1 // pred_check
      _
    $region27: #{tpu_custom_call.1} parent=1 // pred_check_branch
      %66 = sbr.rel (0) target = $region29
    $region28: #{tpu_custom_call.1} parent=1 // pred_region
      _
    $region29: #{tpu_custom_call.1} parent=1 // pred_fallthru
      _
    // Predicated region
    $region30: #{tpu_custom_call.1} parent=1 // pred_check
      _
    $region31: #{tpu_custom_call.1} parent=1 // pred_check_branch
      %68 = sbr.rel (0) target = $region33
    $region32: #{tpu_custom_call.1} parent=1 // pred_region
      %69 = dma.done [#allocation5], 16
    $region33: #{tpu_custom_call.1} parent=1 // pred_fallthru
      _
    // Predicated region
    $region34: #{tpu_custom_call.1} parent=1 // pred_check
      _
    $region35: #{tpu_custom_call.1} parent=1 // pred_check_branch
      %71 = sbr.rel (0) target = $region37
    $region36: #{tpu_custom_call.1} parent=1 // pred_region
      %72 = dma.done [#allocation7], 16
    $region37: #{tpu_custom_call.1} parent=1 // pred_fallthru
      _
    // Predicated region
    $region38: #{tpu_custom_call.1} parent=1 // pred_check
      _
    $region39: #{tpu_custom_call.1} parent=1 // pred_check_branch
      %74 = sbr.rel (0) target = $region41
    $region40: #{tpu_custom_call.1} parent=1 // pred_region
      %75 = dma.done [#allocation3], 12288
    $region41: #{tpu_custom_call.1} parent=1 // pred_fallthru
      _
    // Predicated region
    $region42: #{tpu_custom_call.1} parent=1 // pred_check
      _
    $region43: #{tpu_custom_call.1} parent=1 // pred_check_branch
      %77 = sbr.rel (0) target = $region45
    $region44: #{tpu_custom_call.1} parent=1 // pred_region
      %78 = dma.done [#allocation10], 9216
    $region45: #{tpu_custom_call.1} parent=1 // pred_fallthru
      _
    %79 = sfence
    %v81 = vld [vmem:[#allocation9] sm:$0xff]
    %v82 = vld [vmem:[#allocation9 + $0x8] sm:$0xf]
    %v83 = vld [vmem:[#allocation9 + $0xc] sm:$0xff]
    %v84 = vld [vmem:[#allocation9 + $0x14] sm:$0xf]
    %v85 = vld [vmem:[#allocation9 + $0x18] sm:$0xff]
    %v86 = vld [vmem:[#allocation9 + $0x20] sm:$0xf]
    %v87 = vld [vmem:[#allocation9 + $0x24] sm:$0xff]
    %v88 = vld [vmem:[#allocation9 + $0x2c] sm:$0xf]
    %v89 = vld [vmem:[#allocation9 + $0x30] sm:$0xff]
    %v90 = vld [vmem:[#allocation9 + $0x38] sm:$0xf]
    %v91 = vld [vmem:[#allocation9 + $0x3c] sm:$0xff]
    %v92 = vld [vmem:[#allocation9 + $0x44] sm:$0xf]
    %v93 = vld [vmem:[#allocation9 + $0x48] sm:$0xff]
    %v94 = vld [vmem:[#allocation9 + $0x50] sm:$0xf]
    %v95 = vld [vmem:[#allocation9 + $0x54] sm:$0xff]
    %v96 = vld [vmem:[#allocation9 + $0x5c] sm:$0xf]
    %v97 = vld [vmem:[#allocation9 + $0x60] sm:$0xff]
    %v98 = vld [vmem:[#allocation9 + $0x68] sm:$0xf]
    %v99 = vld [vmem:[#allocation9 + $0x6c] sm:$0xff]
    %v100 = vld [vmem:[#allocation9 + $0x74] sm:$0xf]
    %v101 = vld [vmem:[#allocation9 + $0x78] sm:$0xff]
    %v102 = vld [vmem:[#allocation9 + $0x80] sm:$0xf]
    %v103 = vld [vmem:[#allocation9 + $0x84] sm:$0xff]
    %v104 = vld [vmem:[#allocation9 + $0x8c] sm:$0xf]
    %v105 = vld [vmem:[#allocation9 + $0x90] sm:$0xff]
    %v106 = vld [vmem:[#allocation9 + $0x98] sm:$0xf]
    %v107 = vld [vmem:[#allocation9 + $0x9c] sm:$0xff]
    %v108 = vld [vmem:[#allocation9 + $0xa4] sm:$0xf]
    %v109 = vld [vmem:[#allocation9 + $0xa8] sm:$0xff]
    %v110 = vld [vmem:[#allocation9 + $0xb0] sm:$0xf]
    %v111 = vld [vmem:[#allocation9 + $0xb4] sm:$0xff]
    %v112 = vld [vmem:[#allocation9 + $0xbc] sm:$0xf]
    %v113 = vld [vmem:[%s6] ss:$0 sm:$0xff]
    %s114 = sld [smem:[#allocation2]]
    %s115 = sshra.s32 %s114, 3
    %s116 = sand.u32 %s114, 7
    %s117 = sshra.s32 %s114, 3
    %s118 = sand.u32 %s114, 7
    %s119 = smul.u32 %s115, 3
    %s120 = smul.u32 %s119, 8
    %s121 = sadd.s32 %s120, %s118
    %s122 = scalar_lea.vmem [#allocation8], %s121
    %v123 = vld [vmem:[%s122] ss:$8 sm:$0x7]
    %s124 = sld [smem:[#allocation6]]
    %s125 = sshra.s32 %s124, 3
    %s126 = sand.u32 %s124, 7
    %s127 = sshra.s32 %s124, 3
    %s128 = sand.u32 %s124, 7
    %s129 = smul.u32 %s125, 3
    %s130 = smul.u32 %s129, 8
    %s131 = sadd.s32 %s130, %s128
    %s132 = scalar_lea.vmem [#allocation8], %s131
    %v133 = vld [vmem:[%s132] ss:$8 sm:$0x7]
    %v135 = vlaneseq
    %v136 = vshrl.u32 %v135, 7
    %v137 = vsub.s32 0, %v136
    %v138 = vrot.slane %v123, %v137
    %v139 = vlaneseq
    %v140 = vshrl.u32 %v139, 7
    %v141 = vsub.s32 1, %v140
    %v142 = vrot.slane %v123, %v141
    %v143 = vlaneseq
    %v144 = vshrl.u32 %v143, 7
    %v145 = vsub.s32 2, %v144
    %v146 = vrot.slane %v123, %v145
    %v151 = vlaneseq
    %v152 = vshrl.u32 %v151, 7
    %v153 = vsub.s32 0, %v152
    %v154 = vrot.slane %v133, %v153
    %v155 = vlaneseq
    %v156 = vshrl.u32 %v155, 7
    %v157 = vsub.s32 1, %v156
    %v158 = vrot.slane %v133, %v157
    %v159 = vlaneseq
    %v160 = vshrl.u32 %v159, 7
    %v161 = vsub.s32 2, %v160
    %v162 = vrot.slane %v133, %v161
    %vm166 = vcmask 1040384
    %v167 = vsel %vm166, %v138, %v154
    %v168 = vsel %vm166, %v142, %v158
    %v169 = vsel %vm166, %v146, %v162
    %v202 = vunpack.c.l.b16 %v81
    %v203 = vunpack.c.h.b16 %v81
    %v204 = vunpack.c.l.b16 %v82
    %v205 = vunpack.c.l.b16 %v83
    %v206 = vunpack.c.h.b16 %v83
    %v207 = vunpack.c.l.b16 %v84
    %v208 = vunpack.c.l.b16 %v85
    %v209 = vunpack.c.h.b16 %v85
    %v210 = vunpack.c.l.b16 %v86
    %v211 = vunpack.c.l.b16 %v87
    %v212 = vunpack.c.h.b16 %v87
    %v213 = vunpack.c.l.b16 %v88
    %v214 = vunpack.c.l.b16 %v89
    %v215 = vunpack.c.h.b16 %v89
    %v216 = vunpack.c.l.b16 %v90
    %v217 = vunpack.c.l.b16 %v91
    %v218 = vunpack.c.h.b16 %v91
    %v219 = vunpack.c.l.b16 %v92
    %v220 = vunpack.c.l.b16 %v93
    %v221 = vunpack.c.h.b16 %v93
    %v222 = vunpack.c.l.b16 %v94
    %v223 = vunpack.c.l.b16 %v95
    %v224 = vunpack.c.h.b16 %v95
    %v225 = vunpack.c.l.b16 %v96
    %v226 = vunpack.c.l.b16 %v97
    %v227 = vunpack.c.h.b16 %v97
    %v228 = vunpack.c.l.b16 %v98
    %v229 = vunpack.c.l.b16 %v99
    %v230 = vunpack.c.h.b16 %v99
    %v231 = vunpack.c.l.b16 %v100
    %v232 = vunpack.c.l.b16 %v101
    %v233 = vunpack.c.h.b16 %v101
    %v234 = vunpack.c.l.b16 %v102
    %v235 = vunpack.c.l.b16 %v103
    %v236 = vunpack.c.h.b16 %v103
    %v237 = vunpack.c.l.b16 %v104
    %v238 = vunpack.c.l.b16 %v105
    %v239 = vunpack.c.h.b16 %v105
    %v240 = vunpack.c.l.b16 %v106
    %v241 = vunpack.c.l.b16 %v107
    %v242 = vunpack.c.h.b16 %v107
    %v243 = vunpack.c.l.b16 %v108
    %v244 = vunpack.c.l.b16 %v109
    %v245 = vunpack.c.h.b16 %v109
    %v246 = vunpack.c.l.b16 %v110
    %v247 = vunpack.c.l.b16 %v111
    %v248 = vunpack.c.h.b16 %v111
    %v249 = vunpack.c.l.b16 %v112
    %v250 = vpack.c.b16 %v205, %v202
    %v251 = vpack.c.b16 %v206, %v203
    %v252 = vpack.c.b16 %v207, %v204
    %v253 = vpack.c.b16 %v211, %v208
    %v254 = vpack.c.b16 %v212, %v209
    %v255 = vpack.c.b16 %v213, %v210
    %v256 = vpack.c.b16 %v217, %v214
    %v257 = vpack.c.b16 %v218, %v215
    %v258 = vpack.c.b16 %v219, %v216
    %v259 = vpack.c.b16 %v223, %v220
    %v260 = vpack.c.b16 %v224, %v221
    %v261 = vpack.c.b16 %v225, %v222
    %v262 = vpack.c.b16 %v229, %v226
    %v263 = vpack.c.b16 %v230, %v227
    %v264 = vpack.c.b16 %v231, %v228
    %v265 = vpack.c.b16 %v235, %v232
    %v266 = vpack.c.b16 %v236, %v233
    %v267 = vpack.c.b16 %v237, %v234
    %v268 = vpack.c.b16 %v241, %v238
    %v269 = vpack.c.b16 %v242, %v239
    %v270 = vpack.c.b16 %v243, %v240
    %v271 = vpack.c.b16 %v247, %v244
    %v272 = vpack.c.b16 %v248, %v245
    %v273 = vpack.c.b16 %v249, %v246
    %298 = vmatprep.subr.bf16.mxu0 %v272
    %299 = vmatpush1.bf16.msra.mxu0 %v271
    %300 = vmatprep.subr.bf16.mxu0 %v269
    %301 = vmatpush1.bf16.msra.mxu0 %v268
    %302 = vmatprep.subr.bf16.mxu0 %v266
    %303 = vmatpush1.bf16.msra.mxu0 %v265
    %304 = vmatprep.subr.bf16.mxu0 %v263
    %305 = vmatpush1.bf16.msra.mxu0 %v262
    %306 = vmatprep.subr.bf16.mxu0 %v260
    %307 = vmatpush1.bf16.msra.mxu0 %v259
    %308 = vmatprep.subr.bf16.mxu0 %v257
    %309 = vmatpush1.bf16.msra.mxu0 %v256
    %310 = vmatprep.subr.bf16.mxu0 %v254
    %311 = vmatpush1.bf16.msra.mxu0 %v253
    %312 = vmatprep.subr.bf16.mxu0 %v251
    %313 = vmatpush1.bf16.msra.mxu0 %v250
    %314 = vmatprep.subr.bf16.mxu0 0
    %315 = vmatpush2.bf16.msra.mxu0 0
    %316 = vmatprep.subr.bf16.mxu0 0
    %317 = vmatpush2.bf16.msra.mxu0 0
    %318 = vmatprep.subr.bf16.mxu0 0
    %319 = vmatpush2.bf16.msra.mxu0 0
    %320 = vmatprep.subr.bf16.mxu0 0
    %321 = vmatpush2.bf16.msra.mxu0 0
    %322 = vmatprep.subr.bf16.mxu0 0
    %323 = vmatpush2.bf16.msra.mxu0 0
    %324 = vmatprep.subr.bf16.mxu0 0
    %325 = vmatpush2.bf16.msra.mxu0 0
    %326 = vmatprep.subr.bf16.mxu0 0
    %327 = vmatpush2.bf16.msra.mxu0 0
    %328 = vmatprep.subr.bf16.mxu0 0
    %329 = vmatpush2.bf16.msra.mxu0 0
    %330 = vmatprep.mubr.bf16.mxu0 0
    %331 = vmatmul.mubr.bf16.gmra.mxu0 0
    %v332 = vpop.f32.mrf.mxu0
    %v333 = vadd.f32 0.0, %v332
    %v334 = vpop.f32.mrf.mxu0
    %v335 = vadd.f32 0.0, %v334
    %v336 = vpop.f32.mrf.mxu0
    %v337 = vpop.f32.mrf.mxu0
    %338 = vdwg.mxu0
    %339 = vmatprep.subr.bf16.mxu0 0
    %340 = vmatpush1.bf16.msra.mxu0 %v273
    %341 = vmatprep.subr.bf16.mxu0 0
    %342 = vmatpush1.bf16.msra.mxu0 %v270
    %343 = vmatprep.subr.bf16.mxu0 0
    %344 = vmatpush1.bf16.msra.mxu0 %v267
    %345 = vmatprep.subr.bf16.mxu0 0
    %346 = vmatpush1.bf16.msra.mxu0 %v264
    %347 = vmatprep.subr.bf16.mxu0 0
    %348 = vmatpush1.bf16.msra.mxu0 %v261
    %349 = vmatprep.subr.bf16.mxu0 0
    %350 = vmatpush1.bf16.msra.mxu0 %v258
    %351 = vmatprep.subr.bf16.mxu0 0
    %352 = vmatpush1.bf16.msra.mxu0 %v255
    %353 = vmatprep.subr.bf16.mxu0 0
    %354 = vmatpush1.bf16.msra.mxu0 %v252
    %355 = vmatprep.subr.bf16.mxu0 0
    %356 = vmatpush2.bf16.msra.mxu0 0
    %357 = vmatprep.subr.bf16.mxu0 0
    %358 = vmatpush2.bf16.msra.mxu0 0
    %359 = vmatprep.subr.bf16.mxu0 0
    %360 = vmatpush2.bf16.msra.mxu0 0
    %361 = vmatprep.subr.bf16.mxu0 0
    %362 = vmatpush2.bf16.msra.mxu0 0
    %363 = vmatprep.subr.bf16.mxu0 0
    %364 = vmatpush2.bf16.msra.mxu0 0
    %365 = vmatprep.subr.bf16.mxu0 0
    %366 = vmatpush2.bf16.msra.mxu0 0
    %367 = vmatprep.subr.bf16.mxu0 0
    %368 = vmatpush2.bf16.msra.mxu0 0
    %369 = vmatprep.subr.bf16.mxu0 0
    %370 = vmatpush2.bf16.msra.mxu0 0
    %371 = vmatprep.mubr.bf16.mxu0 0
    %372 = vmatmul.mubr.bf16.gmra.mxu0 0
    %v373 = vpop.f32.mrf.mxu0
    %v374 = vadd.f32 0.0, %v373
    %v375 = vpop.f32.mrf.mxu0
    %v376 = vpop.f32.mrf.mxu0
    %v377 = vpop.f32.mrf.mxu0
    %378 = vdwg.mxu0
    %v379 = vadd.f32 %v167, %v333
    %v380 = vadd.f32 %v168, %v335
    %v381 = vxor.u32 %v379, 2147483648
    %v382 = vxor.u32 %v380, 2147483648
    %v383 = vmul.f32 %v381, 1.442695
    %v384 = vpow.pop %v383
    %v385 = vmul.f32 %v382, 1.442695
    %v386 = vpow.pop %v385
    %v387 = vadd.f32 %v384, 1.0
    %v388 = vadd.f32 %v386, 1.0
    %v389 = vrcp.pop %v387
    %v390 = vmul.f32 1.0, %v389
    %v391 = vrcp.pop %v388
    %v392 = vmul.f32 1.0, %v391
    %v393 = vadd.f32 %v374, %v113
    %v394 = vmul.f32 %v390, %v393
    %v395 = vadd.f32 %v169, %v394
    %v396 = vtanh.pop %v395
    %v397 = vsub.f32 1.0, %v392
    %v398 = vmul.f32 %v397, %v396
    %v399 = vmul.f32 %v392, 0.0
    %v400 = vadd.f32 %v398, %v399
    %s401 = sld [smem:[#allocation2 + $0x1]]
    %s402 = sshra.s32 %s401, 3
    %s403 = sand.u32 %s401, 7
    %s404 = sshra.s32 %s401, 3
    %s405 = sand.u32 %s401, 7
    %s406 = smul.u32 %s402, 3
    %s407 = smul.u32 %s406, 8
    %s408 = sadd.s32 %s407, %s405
    %s409 = scalar_lea.vmem [#allocation8], %s408
    %v410 = vld [vmem:[%s409] ss:$8 sm:$0x7]
    %s411 = sld [smem:[#allocation6 + $0x1]]
    %s412 = sshra.s32 %s411, 3
    %s413 = sand.u32 %s411, 7
    %s414 = sshra.s32 %s411, 3
    %s415 = sand.u32 %s411, 7
    %s416 = smul.u32 %s412, 3
    %s417 = smul.u32 %s416, 8
    %s418 = sadd.s32 %s417, %s415
    %s419 = scalar_lea.vmem [#allocation8], %s418
    %v420 = vld [vmem:[%s419] ss:$8 sm:$0x7]
    %v422 = vlaneseq
    %v423 = vshrl.u32 %v422, 7
    %v424 = vsub.s32 0, %v423
    %v425 = vrot.slane %v410, %v424
    %v426 = vlaneseq
    %v427 = vshrl.u32 %v426, 7
    %v428 = vsub.s32 1, %v427
    %v429 = vrot.slane %v410, %v428
    %v430 = vlaneseq
    %v431 = vshrl.u32 %v430, 7
    %v432 = vsub.s32 2, %v431
    %v433 = vrot.slane %v410, %v432
    %v438 = vlaneseq
    %v439 = vshrl.u32 %v438, 7
    %v440 = vsub.s32 0, %v439
    %v441 = vrot.slane %v420, %v440
    %v442 = vlaneseq
    %v443 = vshrl.u32 %v442, 7
    %v444 = vsub.s32 1, %v443
    %v445 = vrot.slane %v420, %v444
    %v446 = vlaneseq
    %v447 = vshrl.u32 %v446, 7
    %v448 = vsub.s32 2, %v447
    %v449 = vrot.slane %v420, %v448
    %v453 = vsel %vm166, %v425, %v441
    %v454 = vsel %vm166, %v429, %v445
    %v455 = vsel %vm166, %v433, %v449
    %v456 = vpack.c.bf16 %v400, %v400
    %457 = vmatprep.subr.bf16.mxu0 %v272
    %458 = vmatpush1.bf16.msra.mxu0 %v271
    %459 = vmatprep.subr.bf16.mxu0 %v269
    %460 = vmatpush1.bf16.msra.mxu0 %v268
    %461 = vmatprep.subr.bf16.mxu0 %v266
    %462 = vmatpush1.bf16.msra.mxu0 %v265
    %463 = vmatprep.subr.bf16.mxu0 %v263
    %464 = vmatpush1.bf16.msra.mxu0 %v262
    %465 = vmatprep.subr.bf16.mxu0 %v260
    %466 = vmatpush1.bf16.msra.mxu0 %v259
    %467 = vmatprep.subr.bf16.mxu0 %v257
    %468 = vmatpush1.bf16.msra.mxu0 %v256
    %469 = vmatprep.subr.bf16.mxu0 %v254
    %470 = vmatpush1.bf16.msra.mxu0 %v253
    %471 = vmatprep.subr.bf16.mxu0 %v251
    %472 = vmatpush1.bf16.msra.mxu0 %v250
    %473 = vmatprep.subr.bf16.mxu0 0
    %474 = vmatpush2.bf16.msra.mxu0 0
    %475 = vmatprep.subr.bf16.mxu0 0
    %476 = vmatpush2.bf16.msra.mxu0 0
    %477 = vmatprep.subr.bf16.mxu0 0
    %478 = vmatpush2.bf16.msra.mxu0 0
    %479 = vmatprep.subr.bf16.mxu0 0
    %480 = vmatpush2.bf16.msra.mxu0 0
    %481 = vmatprep.subr.bf16.mxu0 0
    %482 = vmatpush2.bf16.msra.mxu0 0
    %483 = vmatprep.subr.bf16.mxu0 0
    %484 = vmatpush2.bf16.msra.mxu0 0
    %485 = vmatprep.subr.bf16.mxu0 0
    %486 = vmatpush2.bf16.msra.mxu0 0
    %487 = vmatprep.subr.bf16.mxu0 0
    %488 = vmatpush2.bf16.msra.mxu0 0
    %489 = vmatprep.mubr.bf16.mxu0 0
    %490 = vmatmul.mubr.bf16.gmra.mxu0 %v456
    %v491 = vpop.f32.mrf.mxu0
    %v492 = vadd.f32 0.0, %v491
    %v493 = vpop.f32.mrf.mxu0
    %v494 = vadd.f32 0.0, %v493
    %v495 = vpop.f32.mrf.mxu0
    %v496 = vpop.f32.mrf.mxu0
    %497 = vdwg.mxu0
    %498 = vmatprep.subr.bf16.mxu0 0
    %499 = vmatpush1.bf16.msra.mxu0 %v273
    %500 = vmatprep.subr.bf16.mxu0 0
    %501 = vmatpush1.bf16.msra.mxu0 %v270
    %502 = vmatprep.subr.bf16.mxu0 0
    %503 = vmatpush1.bf16.msra.mxu0 %v267
    %504 = vmatprep.subr.bf16.mxu0 0
    %505 = vmatpush1.bf16.msra.mxu0 %v264
    %506 = vmatprep.subr.bf16.mxu0 0
    %507 = vmatpush1.bf16.msra.mxu0 %v261
    %508 = vmatprep.subr.bf16.mxu0 0
    %509 = vmatpush1.bf16.msra.mxu0 %v258
    %510 = vmatprep.subr.bf16.mxu0 0
    %511 = vmatpush1.bf16.msra.mxu0 %v255
    %512 = vmatprep.subr.bf16.mxu0 0
    %513 = vmatpush1.bf16.msra.mxu0 %v252
    %514 = vmatprep.subr.bf16.mxu0 0
    %515 = vmatpush2.bf16.msra.mxu0 0
    %516 = vmatprep.subr.bf16.mxu0 0
    %517 = vmatpush2.bf16.msra.mxu0 0
    %518 = vmatprep.subr.bf16.mxu0 0
    %519 = vmatpush2.bf16.msra.mxu0 0
    %520 = vmatprep.subr.bf16.mxu0 0
    %521 = vmatpush2.bf16.msra.mxu0 0
    %522 = vmatprep.subr.bf16.mxu0 0
    %523 = vmatpush2.bf16.msra.mxu0 0
    %524 = vmatprep.subr.bf16.mxu0 0
    %525 = vmatpush2.bf16.msra.mxu0 0
    %526 = vmatprep.subr.bf16.mxu0 0
    %527 = vmatpush2.bf16.msra.mxu0 0
    %528 = vmatprep.subr.bf16.mxu0 0
    %529 = vmatpush2.bf16.msra.mxu0 0
    %530 = vmatprep.mubr.bf16.mxu0 0
    %531 = vmatmul.mubr.bf16.gmra.mxu0 %v456
    %v532 = vpop.f32.mrf.mxu0
    %v533 = vadd.f32 0.0, %v532
    %v534 = vpop.f32.mrf.mxu0
    %v535 = vpop.f32.mrf.mxu0
    %v536 = vpop.f32.mrf.mxu0
    %537 = vdwg.mxu0
    %v538 = vadd.f32 %v453, %v492
    %v539 = vadd.f32 %v454, %v494
    %v540 = vxor.u32 %v538, 2147483648
    %v541 = vxor.u32 %v539, 2147483648
    %v542 = vmul.f32 %v540, 1.442695
    %v543 = vpow.pop %v542
    %v544 = vmul.f32 %v541, 1.442695
    %v545 = vpow.pop %v544
    %v546 = vadd.f32 %v543, 1.0
    %v547 = vadd.f32 %v545, 1.0
    %v548 = vrcp.pop %v546
    %v549 = vmul.f32 1.0, %v548
    %v550 = vrcp.pop %v547
    %v551 = vmul.f32 1.0, %v550
    %v552 = vadd.f32 %v533, %v113
    %v553 = vmul.f32 %v549, %v552
    %v554 = vadd.f32 %v455, %v553
    %v555 = vtanh.pop %v554
    %v556 = vsub.f32 1.0, %v551
    %v557 = vmul.f32 %v556, %v555
    %v558 = vmul.f32 %v551, %v400
    %v559 = vadd.f32 %v557, %v558
    %s560 = sld [smem:[#allocation2 + $0x2]]
    %s561 = sshra.s32 %s560, 3
    %s562 = sand.u32 %s560, 7
    %s563 = sshra.s32 %s560, 3
    %s564 = sand.u32 %s560, 7
    %s565 = smul.u32 %s561, 3
    %s566 = smul.u32 %s565, 8
    %s567 = sadd.s32 %s566, %s564
    %s568 = scalar_lea.vmem [#allocation8], %s567
    %v569 = vld [vmem:[%s568] ss:$8 sm:$0x7]
    %s570 = sld [smem:[#allocation6 + $0x2]]
    %s571 = sshra.s32 %s570, 3
    %s572 = sand.u32 %s570, 7
    %s573 = sshra.s32 %s570, 3
    %s574 = sand.u32 %s570, 7
    %s575 = smul.u32 %s571, 3
    %s576 = smul.u32 %s575, 8
    %s577 = sadd.s32 %s576, %s574
    %s578 = scalar_lea.vmem [#allocation8], %s577
    %v579 = vld [vmem:[%s578] ss:$8 sm:$0x7]
    %v581 = vlaneseq
    %v582 = vshrl.u32 %v581, 7
    %v583 = vsub.s32 0, %v582
    %v584 = vrot.slane %v569, %v583
    %v585 = vlaneseq
    %v586 = vshrl.u32 %v585, 7
    %v587 = vsub.s32 1, %v586
    %v588 = vrot.slane %v569, %v587
    %v589 = vlaneseq
    %v590 = vshrl.u32 %v589, 7
    %v591 = vsub.s32 2, %v590
    %v592 = vrot.slane %v569, %v591
    %v597 = vlaneseq
    %v598 = vshrl.u32 %v597, 7
    %v599 = vsub.s32 0, %v598
    %v600 = vrot.slane %v579, %v599
    %v601 = vlaneseq
    %v602 = vshrl.u32 %v601, 7
    %v603 = vsub.s32 1, %v602
    %v604 = vrot.slane %v579, %v603
    %v605 = vlaneseq
    %v606 = vshrl.u32 %v605, 7
    %v607 = vsub.s32 2, %v606
    %v608 = vrot.slane %v579, %v607
    %v612 = vsel %vm166, %v584, %v600
    %v613 = vsel %vm166, %v588, %v604
    %v614 = vsel %vm166, %v592, %v608
    %v615 = vpack.c.bf16 %v559, %v559
    %616 = vmatprep.subr.bf16.mxu0 %v272
    %617 = vmatpush1.bf16.msra.mxu0 %v271
    %618 = vmatprep.subr.bf16.mxu0 %v269
    %619 = vmatpush1.bf16.msra.mxu0 %v268
    %620 = vmatprep.subr.bf16.mxu0 %v266
    %621 = vmatpush1.bf16.msra.mxu0 %v265
    %622 = vmatprep.subr.bf16.mxu0 %v263
    %623 = vmatpush1.bf16.msra.mxu0 %v262
    %624 = vmatprep.subr.bf16.mxu0 %v260
    %625 = vmatpush1.bf16.msra.mxu0 %v259
    %626 = vmatprep.subr.bf16.mxu0 %v257
    %627 = vmatpush1.bf16.msra.mxu0 %v256
    %628 = vmatprep.subr.bf16.mxu0 %v254
    %629 = vmatpush1.bf16.msra.mxu0 %v253
    %630 = vmatprep.subr.bf16.mxu0 %v251
    %631 = vmatpush1.bf16.msra.mxu0 %v250
    %632 = vmatprep.subr.bf16.mxu0 0
    %633 = vmatpush2.bf16.msra.mxu0 0
    %634 = vmatprep.subr.bf16.mxu0 0
    %635 = vmatpush2.bf16.msra.mxu0 0
    %636 = vmatprep.subr.bf16.mxu0 0
    %637 = vmatpush2.bf16.msra.mxu0 0
    %638 = vmatprep.subr.bf16.mxu0 0
    %639 = vmatpush2.bf16.msra.mxu0 0
    %640 = vmatprep.subr.bf16.mxu0 0
    %641 = vmatpush2.bf16.msra.mxu0 0
    %642 = vmatprep.subr.bf16.mxu0 0
    %643 = vmatpush2.bf16.msra.mxu0 0
    %644 = vmatprep.subr.bf16.mxu0 0
    %645 = vmatpush2.bf16.msra.mxu0 0
    %646 = vmatprep.subr.bf16.mxu0 0
    %647 = vmatpush2.bf16.msra.mxu0 0
    %648 = vmatprep.mubr.bf16.mxu0 0
    %649 = vmatmul.mubr.bf16.gmra.mxu0 %v615
    %v650 = vpop.f32.mrf.mxu0
    %v651 = vadd.f32 0.0, %v650
    %v652 = vpop.f32.mrf.mxu0
    %v653 = vadd.f32 0.0, %v652
    %v654 = vpop.f32.mrf.mxu0
    %v655 = vpop.f32.mrf.mxu0
    %656 = vdwg.mxu0
    %657 = vmatprep.subr.bf16.mxu0 0
    %658 = vmatpush1.bf16.msra.mxu0 %v273
    %659 = vmatprep.subr.bf16.mxu0 0
    %660 = vmatpush1.bf16.msra.mxu0 %v270
    %661 = vmatprep.subr.bf16.mxu0 0
    %662 = vmatpush1.bf16.msra.mxu0 %v267
    %663 = vmatprep.subr.bf16.mxu0 0
    %664 = vmatpush1.bf16.msra.mxu0 %v264
    %665 = vmatprep.subr.bf16.mxu0 0
    %666 = vmatpush1.bf16.msra.mxu0 %v261
    %667 = vmatprep.subr.bf16.mxu0 0
    %668 = vmatpush1.bf16.msra.mxu0 %v258
    %669 = vmatprep.subr.bf16.mxu0 0
    %670 = vmatpush1.bf16.msra.mxu0 %v255
    %671 = vmatprep.subr.bf16.mxu0 0
    %672 = vmatpush1.bf16.msra.mxu0 %v252
    %673 = vmatprep.subr.bf16.mxu0 0
    %674 = vmatpush2.bf16.msra.mxu0 0
    %675 = vmatprep.subr.bf16.mxu0 0
    %676 = vmatpush2.bf16.msra.mxu0 0
    %677 = vmatprep.subr.bf16.mxu0 0
    %678 = vmatpush2.bf16.msra.mxu0 0
    %679 = vmatprep.subr.bf16.mxu0 0
    %680 = vmatpush2.bf16.msra.mxu0 0
    %681 = vmatprep.subr.bf16.mxu0 0
    %682 = vmatpush2.bf16.msra.mxu0 0
    %683 = vmatprep.subr.bf16.mxu0 0
    %684 = vmatpush2.bf16.msra.mxu0 0
    %685 = vmatprep.subr.bf16.mxu0 0
    %686 = vmatpush2.bf16.msra.mxu0 0
    %687 = vmatprep.subr.bf16.mxu0 0
    %688 = vmatpush2.bf16.msra.mxu0 0
    %689 = vmatprep.mubr.bf16.mxu0 0
    %690 = vmatmul.mubr.bf16.gmra.mxu0 %v615
    %v691 = vpop.f32.mrf.mxu0
    %v692 = vadd.f32 0.0, %v691
    %v693 = vpop.f32.mrf.mxu0
    %v694 = vpop.f32.mrf.mxu0
    %v695 = vpop.f32.mrf.mxu0
    %696 = vdwg.mxu0
    %v697 = vadd.f32 %v612, %v651
    %v698 = vadd.f32 %v613, %v653
    %v699 = vxor.u32 %v697, 2147483648
    %v700 = vxor.u32 %v698, 2147483648
    %v701 = vmul.f32 %v699, 1.442695
    %v702 = vpow.pop %v701
    %v703 = vmul.f32 %v700, 1.442695
    %v704 = vpow.pop %v703
    %v705 = vadd.f32 %v702, 1.0
    %v706 = vadd.f32 %v704, 1.0
    %v707 = vrcp.pop %v705
    %v708 = vmul.f32 1.0, %v707
    %v709 = vrcp.pop %v706
    %v710 = vmul.f32 1.0, %v709
    %v711 = vadd.f32 %v692, %v113
    %v712 = vmul.f32 %v708, %v711
    %v713 = vadd.f32 %v614, %v712
    %v714 = vtanh.pop %v713
    %v715 = vsub.f32 1.0, %v710
    %v716 = vmul.f32 %v715, %v714
    %v717 = vmul.f32 %v710, %v559
    %v718 = vadd.f32 %v716, %v717
    %s719 = sld [smem:[#allocation2 + $0x3]]
    %s720 = sshra.s32 %s719, 3
    %s721 = sand.u32 %s719, 7
    %s722 = sshra.s32 %s719, 3
    %s723 = sand.u32 %s719, 7
    %s724 = smul.u32 %s720, 3
    %s725 = smul.u32 %s724, 8
    %s726 = sadd.s32 %s725, %s723
    %s727 = scalar_lea.vmem [#allocation8], %s726
    %v728 = vld [vmem:[%s727] ss:$8 sm:$0x7]
    %s729 = sld [smem:[#allocation6 + $0x3]]
    %s730 = sshra.s32 %s729, 3
    %s731 = sand.u32 %s729, 7
    %s732 = sshra.s32 %s729, 3
    %s733 = sand.u32 %s729, 7
    %s734 = smul.u32 %s730, 3
    %s735 = smul.u32 %s734, 8
    %s736 = sadd.s32 %s735, %s733
    %s737 = scalar_lea.vmem [#allocation8], %s736
    %v738 = vld [vmem:[%s737] ss:$8 sm:$0x7]
    %v740 = vlaneseq
    %v741 = vshrl.u32 %v740, 7
    %v742 = vsub.s32 0, %v741
    %v743 = vrot.slane %v728, %v742
    %v744 = vlaneseq
    %v745 = vshrl.u32 %v744, 7
    %v746 = vsub.s32 1, %v745
    %v747 = vrot.slane %v728, %v746
    %v748 = vlaneseq
    %v749 = vshrl.u32 %v748, 7
    %v750 = vsub.s32 2, %v749
    %v751 = vrot.slane %v728, %v750
    %v756 = vlaneseq
    %v757 = vshrl.u32 %v756, 7
    %v758 = vsub.s32 0, %v757
    %v759 = vrot.slane %v738, %v758
    %v760 = vlaneseq
    %v761 = vshrl.u32 %v760, 7
    %v762 = vsub.s32 1, %v761
    %v763 = vrot.slane %v738, %v762
    %v764 = vlaneseq
    %v765 = vshrl.u32 %v764, 7
    %v766 = vsub.s32 2, %v765
    %v767 = vrot.slane %v738, %v766
    %v771 = vsel %vm166, %v743, %v759
    %v772 = vsel %vm166, %v747, %v763
    %v773 = vsel %vm166, %v751, %v767
    %v774 = vpack.c.bf16 %v718, %v718
    %775 = vmatprep.subr.bf16.mxu0 %v272
    %776 = vmatpush1.bf16.msra.mxu0 %v271
    %777 = vmatprep.subr.bf16.mxu0 %v269
    %778 = vmatpush1.bf16.msra.mxu0 %v268
    %779 = vmatprep.subr.bf16.mxu0 %v266
    %780 = vmatpush1.bf16.msra.mxu0 %v265
    %781 = vmatprep.subr.bf16.mxu0 %v263
    %782 = vmatpush1.bf16.msra.mxu0 %v262
    %783 = vmatprep.subr.bf16.mxu0 %v260
    %784 = vmatpush1.bf16.msra.mxu0 %v259
    %785 = vmatprep.subr.bf16.mxu0 %v257
    %786 = vmatpush1.bf16.msra.mxu0 %v256
    %787 = vmatprep.subr.bf16.mxu0 %v254
    %788 = vmatpush1.bf16.msra.mxu0 %v253
    %789 = vmatprep.subr.bf16.mxu0 %v251
    %790 = vmatpush1.bf16.msra.mxu0 %v250
    %791 = vmatprep.subr.bf16.mxu0 0
    %792 = vmatpush2.bf16.msra.mxu0 0
    %793 = vmatprep.subr.bf16.mxu0 0
    %794 = vmatpush2.bf16.msra.mxu0 0
    %795 = vmatprep.subr.bf16.mxu0 0
    %796 = vmatpush2.bf16.msra.mxu0 0
    %797 = vmatprep.subr.bf16.mxu0 0
    %798 = vmatpush2.bf16.msra.mxu0 0
    %799 = vmatprep.subr.bf16.mxu0 0
    %800 = vmatpush2.bf16.msra.mxu0 0
    %801 = vmatprep.subr.bf16.mxu0 0
    %802 = vmatpush2.bf16.msra.mxu0 0
    %803 = vmatprep.subr.bf16.mxu0 0
    %804 = vmatpush2.bf16.msra.mxu0 0
    %805 = vmatprep.subr.bf16.mxu0 0
    %806 = vmatpush2.bf16.msra.mxu0 0
    %807 = vmatprep.mubr.bf16.mxu0 0
    %808 = vmatmul.mubr.bf16.gmra.mxu0 %v774
    %v809 = vpop.f32.mrf.mxu0
    %v810 = vadd.f32 0.0, %v809
    %v811 = vpop.f32.mrf.mxu0
    %v812 = vadd.f32 0.0, %v811
    %v813 = vpop.f32.mrf.mxu0
    %v814 = vpop.f32.mrf.mxu0
    %815 = vdwg.mxu0
    %816 = vmatprep.subr.bf16.mxu0 0
    %817 = vmatpush1.bf16.msra.mxu0 %v273
    %818 = vmatprep.subr.bf16.mxu0 0
    %819 = vmatpush1.bf16.msra.mxu0 %v270
    %820 = vmatprep.subr.bf16.mxu0 0
    %821 = vmatpush1.bf16.msra.mxu0 %v267
    %822 = vmatprep.subr.bf16.mxu0 0
    %823 = vmatpush1.bf16.msra.mxu0 %v264
    %824 = vmatprep.subr.bf16.mxu0 0
    %825 = vmatpush1.bf16.msra.mxu0 %v261
    %826 = vmatprep.subr.bf16.mxu0 0
    %827 = vmatpush1.bf16.msra.mxu0 %v258
    %828 = vmatprep.subr.bf16.mxu0 0
    %829 = vmatpush1.bf16.msra.mxu0 %v255
    %830 = vmatprep.subr.bf16.mxu0 0
    %831 = vmatpush1.bf16.msra.mxu0 %v252
    %832 = vmatprep.subr.bf16.mxu0 0
    %833 = vmatpush2.bf16.msra.mxu0 0
    %834 = vmatprep.subr.bf16.mxu0 0
    %835 = vmatpush2.bf16.msra.mxu0 0
    %836 = vmatprep.subr.bf16.mxu0 0
    %837 = vmatpush2.bf16.msra.mxu0 0
    %838 = vmatprep.subr.bf16.mxu0 0
    %839 = vmatpush2.bf16.msra.mxu0 0
    %840 = vmatprep.subr.bf16.mxu0 0
    %841 = vmatpush2.bf16.msra.mxu0 0
    %842 = vmatprep.subr.bf16.mxu0 0
    %843 = vmatpush2.bf16.msra.mxu0 0
    %844 = vmatprep.subr.bf16.mxu0 0
    %845 = vmatpush2.bf16.msra.mxu0 0
    %846 = vmatprep.subr.bf16.mxu0 0
    %847 = vmatpush2.bf16.msra.mxu0 0
    %848 = vmatprep.mubr.bf16.mxu0 0
    %849 = vmatmul.mubr.bf16.gmra.mxu0 %v774
    %v850 = vpop.f32.mrf.mxu0
    %v851 = vadd.f32 0.0, %v850
    %v852 = vpop.f32.mrf.mxu0
    %v853 = vpop.f32.mrf.mxu0
    %v854 = vpop.f32.mrf.mxu0
    %855 = vdwg.mxu0
    %v856 = vadd.f32 %v771, %v810
    %v857 = vadd.f32 %v772, %v812
    %v858 = vxor.u32 %v856, 2147483648
    %v859 = vxor.u32 %v857, 2147483648
    %v860 = vmul.f32 %v858, 1.442695
    %v861 = vpow.pop %v860
    %v862 = vmul.f32 %v859, 1.442695
    %v863 = vpow.pop %v862
    %v864 = vadd.f32 %v861, 1.0
    %v865 = vadd.f32 %v863, 1.0
    %v866 = vrcp.pop %v864
    %v867 = vmul.f32 1.0, %v866
    %v868 = vrcp.pop %v865
    %v869 = vmul.f32 1.0, %v868
    %v870 = vadd.f32 %v851, %v113
    %v871 = vmul.f32 %v867, %v870
    %v872 = vadd.f32 %v773, %v871
    %v873 = vtanh.pop %v872
    %v874 = vsub.f32 1.0, %v869
    %v875 = vmul.f32 %v874, %v873
    %v876 = vmul.f32 %v869, %v718
    %v877 = vadd.f32 %v875, %v876
    %s878 = sld [smem:[#allocation2 + $0x4]]
    %s879 = sshra.s32 %s878, 3
    %s880 = sand.u32 %s878, 7
    %s881 = sshra.s32 %s878, 3
    %s882 = sand.u32 %s878, 7
    %s883 = smul.u32 %s879, 3
    %s884 = smul.u32 %s883, 8
    %s885 = sadd.s32 %s884, %s882
    %s886 = scalar_lea.vmem [#allocation8], %s885
    %v887 = vld [vmem:[%s886] ss:$8 sm:$0x7]
    %s888 = sld [smem:[#allocation6 + $0x4]]
    %s889 = sshra.s32 %s888, 3
    %s890 = sand.u32 %s888, 7
    %s891 = sshra.s32 %s888, 3
    %s892 = sand.u32 %s888, 7
    %s893 = smul.u32 %s889, 3
    %s894 = smul.u32 %s893, 8
    %s895 = sadd.s32 %s894, %s892
    %s896 = scalar_lea.vmem [#allocation8], %s895
    %v897 = vld [vmem:[%s896] ss:$8 sm:$0x7]
    %v899 = vlaneseq
    %v900 = vshrl.u32 %v899, 7
    %v901 = vsub.s32 0, %v900
    %v902 = vrot.slane %v887, %v901
    %v903 = vlaneseq
    %v904 = vshrl.u32 %v903, 7
    %v905 = vsub.s32 1, %v904
    %v906 = vrot.slane %v887, %v905
    %v907 = vlaneseq
    %v908 = vshrl.u32 %v907, 7
    %v909 = vsub.s32 2, %v908
    %v910 = vrot.slane %v887, %v909
    %v915 = vlaneseq
    %v916 = vshrl.u32 %v915, 7
    %v917 = vsub.s32 0, %v916
    %v918 = vrot.slane %v897, %v917
    %v919 = vlaneseq
    %v920 = vshrl.u32 %v919, 7
    %v921 = vsub.s32 1, %v920
    %v922 = vrot.slane %v897, %v921
    %v923 = vlaneseq
    %v924 = vshrl.u32 %v923, 7
    %v925 = vsub.s32 2, %v924
    %v926 = vrot.slane %v897, %v925
    %v930 = vsel %vm166, %v902, %v918
    %v931 = vsel %vm166, %v906, %v922
    %v932 = vsel %vm166, %v910, %v926
    %v933 = vpack.c.bf16 %v877, %v877
    %934 = vmatprep.subr.bf16.mxu0 %v272
    %935 = vmatpush1.bf16.msra.mxu0 %v271
    %936 = vmatprep.subr.bf16.mxu0 %v269
    %937 = vmatpush1.bf16.msra.mxu0 %v268
    %938 = vmatprep.subr.bf16.mxu0 %v266
    %939 = vmatpush1.bf16.msra.mxu0 %v265
    %940 = vmatprep.subr.bf16.mxu0 %v263
    %941 = vmatpush1.bf16.msra.mxu0 %v262
    %942 = vmatprep.subr.bf16.mxu0 %v260
    %943 = vmatpush1.bf16.msra.mxu0 %v259
    %944 = vmatprep.subr.bf16.mxu0 %v257
    %945 = vmatpush1.bf16.msra.mxu0 %v256
    %946 = vmatprep.subr.bf16.mxu0 %v254
    %947 = vmatpush1.bf16.msra.mxu0 %v253
    %948 = vmatprep.subr.bf16.mxu0 %v251
    %949 = vmatpush1.bf16.msra.mxu0 %v250
    %950 = vmatprep.subr.bf16.mxu0 0
    %951 = vmatpush2.bf16.msra.mxu0 0
    %952 = vmatprep.subr.bf16.mxu0 0
    %953 = vmatpush2.bf16.msra.mxu0 0
    %954 = vmatprep.subr.bf16.mxu0 0
    %955 = vmatpush2.bf16.msra.mxu0 0
    %956 = vmatprep.subr.bf16.mxu0 0
    %957 = vmatpush2.bf16.msra.mxu0 0
    %958 = vmatprep.subr.bf16.mxu0 0
    %959 = vmatpush2.bf16.msra.mxu0 0
    %960 = vmatprep.subr.bf16.mxu0 0
    %961 = vmatpush2.bf16.msra.mxu0 0
    %962 = vmatprep.subr.bf16.mxu0 0
    %963 = vmatpush2.bf16.msra.mxu0 0
    %964 = vmatprep.subr.bf16.mxu0 0
    %965 = vmatpush2.bf16.msra.mxu0 0
    %966 = vmatprep.mubr.bf16.mxu0 0
    %967 = vmatmul.mubr.bf16.gmra.mxu0 %v933
    %v968 = vpop.f32.mrf.mxu0
    %v969 = vadd.f32 0.0, %v968
    %v970 = vpop.f32.mrf.mxu0
    %v971 = vadd.f32 0.0, %v970
    %v972 = vpop.f32.mrf.mxu0
    %v973 = vpop.f32.mrf.mxu0
    %974 = vdwg.mxu0
    %975 = vmatprep.subr.bf16.mxu0 0
    %976 = vmatpush1.bf16.msra.mxu0 %v273
    %977 = vmatprep.subr.bf16.mxu0 0
    %978 = vmatpush1.bf16.msra.mxu0 %v270
    %979 = vmatprep.subr.bf16.mxu0 0
    %980 = vmatpush1.bf16.msra.mxu0 %v267
    %981 = vmatprep.subr.bf16.mxu0 0
    %982 = vmatpush1.bf16.msra.mxu0 %v264
    %983 = vmatprep.subr.bf16.mxu0 0
    %984 = vmatpush1.bf16.msra.mxu0 %v261
    %985 = vmatprep.subr.bf16.mxu0 0
    %986 = vmatpush1.bf16.msra.mxu0 %v258
    %987 = vmatprep.subr.bf16.mxu0 0
    %988 = vmatpush1.bf16.msra.mxu0 %v255
    %989 = vmatprep.subr.bf16.mxu0 0
    %990 = vmatpush1.bf16.msra.mxu0 %v252
    %991 = vmatprep.subr.bf16.mxu0 0
    %992 = vmatpush2.bf16.msra.mxu0 0
    %993 = vmatprep.subr.bf16.mxu0 0
    %994 = vmatpush2.bf16.msra.mxu0 0
    %995 = vmatprep.subr.bf16.mxu0 0
    %996 = vmatpush2.bf16.msra.mxu0 0
    %997 = vmatprep.subr.bf16.mxu0 0
    %998 = vmatpush2.bf16.msra.mxu0 0
    %999 = vmatprep.subr.bf16.mxu0 0
    %1000 = vmatpush2.bf16.msra.mxu0 0
    %1001 = vmatprep.subr.bf16.mxu0 0
    %1002 = vmatpush2.bf16.msra.mxu0 0
    %1003 = vmatprep.subr.bf16.mxu0 0
    %1004 = vmatpush2.bf16.msra.mxu0 0
    %1005 = vmatprep.subr.bf16.mxu0 0
    %1006 = vmatpush2.bf16.msra.mxu0 0
    %1007 = vmatprep.mubr.bf16.mxu0 0
    %1008 = vmatmul.mubr.bf16.gmra.mxu0 %v933
    %v1009 = vpop.f32.mrf.mxu0
    %v1010 = vadd.f32 0.0, %v1009
    %v1011 = vpop.f32.mrf.mxu0
    %v1012 = vpop.f32.mrf.mxu0
    %v1013 = vpop.f32.mrf.mxu0
    %1014 = vdwg.mxu0
    %v1015 = vadd.f32 %v930, %v969
    %v1016 = vadd.f32 %v931, %v971
    %v1017 = vxor.u32 %v1015, 2147483648
    %v1018 = vxor.u32 %v1016, 2147483648
    %v1019 = vmul.f32 %v1017, 1.442695
    %v1020 = vpow.pop %v1019
    %v1021 = vmul.f32 %v1018, 1.442695
    %v1022 = vpow.pop %v1021
    %v1023 = vadd.f32 %v1020, 1.0
    %v1024 = vadd.f32 %v1022, 1.0
    %v1025 = vrcp.pop %v1023
    %v1026 = vmul.f32 1.0, %v1025
    %v1027 = vrcp.pop %v1024
    %v1028 = vmul.f32 1.0, %v1027
    %v1029 = vadd.f32 %v1010, %v113
    %v1030 = vmul.f32 %v1026, %v1029
    %v1031 = vadd.f32 %v932, %v1030
    %v1032 = vtanh.pop %v1031
    %v1033 = vsub.f32 1.0, %v1028
    %v1034 = vmul.f32 %v1033, %v1032
    %v1035 = vmul.f32 %v1028, %v877
    %v1036 = vadd.f32 %v1034, %v1035
    %s1037 = sld [smem:[#allocation2 + $0x5]]
    %s1038 = sshra.s32 %s1037, 3
    %s1039 = sand.u32 %s1037, 7
    %s1040 = sshra.s32 %s1037, 3
    %s1041 = sand.u32 %s1037, 7
    %s1042 = smul.u32 %s1038, 3
    %s1043 = smul.u32 %s1042, 8
    %s1044 = sadd.s32 %s1043, %s1041
    %s1045 = scalar_lea.vmem [#allocation8], %s1044
    %v1046 = vld [vmem:[%s1045] ss:$8 sm:$0x7]
    %s1047 = sld [smem:[#allocation6 + $0x5]]
    %s1048 = sshra.s32 %s1047, 3
    %s1049 = sand.u32 %s1047, 7
    %s1050 = sshra.s32 %s1047, 3
    %s1051 = sand.u32 %s1047, 7
    %s1052 = smul.u32 %s1048, 3
    %s1053 = smul.u32 %s1052, 8
    %s1054 = sadd.s32 %s1053, %s1051
    %s1055 = scalar_lea.vmem [#allocation8], %s1054
    %v1056 = vld [vmem:[%s1055] ss:$8 sm:$0x7]
    %v1058 = vlaneseq
    %v1059 = vshrl.u32 %v1058, 7
    %v1060 = vsub.s32 0, %v1059
    %v1061 = vrot.slane %v1046, %v1060
    %v1062 = vlaneseq
    %v1063 = vshrl.u32 %v1062, 7
    %v1064 = vsub.s32 1, %v1063
    %v1065 = vrot.slane %v1046, %v1064
    %v1066 = vlaneseq
    %v1067 = vshrl.u32 %v1066, 7
    %v1068 = vsub.s32 2, %v1067
    %v1069 = vrot.slane %v1046, %v1068
    %v1074 = vlaneseq
    %v1075 = vshrl.u32 %v1074, 7
    %v1076 = vsub.s32 0, %v1075
    %v1077 = vrot.slane %v1056, %v1076
    %v1078 = vlaneseq
    %v1079 = vshrl.u32 %v1078, 7
    %v1080 = vsub.s32 1, %v1079
    %v1081 = vrot.slane %v1056, %v1080
    %v1082 = vlaneseq
    %v1083 = vshrl.u32 %v1082, 7
    %v1084 = vsub.s32 2, %v1083
    %v1085 = vrot.slane %v1056, %v1084
    %v1089 = vsel %vm166, %v1061, %v1077
    %v1090 = vsel %vm166, %v1065, %v1081
    %v1091 = vsel %vm166, %v1069, %v1085
    %v1092 = vpack.c.bf16 %v1036, %v1036
    %1093 = vmatprep.subr.bf16.mxu0 %v272
    %1094 = vmatpush1.bf16.msra.mxu0 %v271
    %1095 = vmatprep.subr.bf16.mxu0 %v269
    %1096 = vmatpush1.bf16.msra.mxu0 %v268
    %1097 = vmatprep.subr.bf16.mxu0 %v266
    %1098 = vmatpush1.bf16.msra.mxu0 %v265
    %1099 = vmatprep.subr.bf16.mxu0 %v263
    %1100 = vmatpush1.bf16.msra.mxu0 %v262
    %1101 = vmatprep.subr.bf16.mxu0 %v260
    %1102 = vmatpush1.bf16.msra.mxu0 %v259
    %1103 = vmatprep.subr.bf16.mxu0 %v257
    %1104 = vmatpush1.bf16.msra.mxu0 %v256
    %1105 = vmatprep.subr.bf16.mxu0 %v254
    %1106 = vmatpush1.bf16.msra.mxu0 %v253
    %1107 = vmatprep.subr.bf16.mxu0 %v251
    %1108 = vmatpush1.bf16.msra.mxu0 %v250
    %1109 = vmatprep.subr.bf16.mxu0 0
    %1110 = vmatpush2.bf16.msra.mxu0 0
    %1111 = vmatprep.subr.bf16.mxu0 0
    %1112 = vmatpush2.bf16.msra.mxu0 0
    %1113 = vmatprep.subr.bf16.mxu0 0
    %1114 = vmatpush2.bf16.msra.mxu0 0
    %1115 = vmatprep.subr.bf16.mxu0 0
    %1116 = vmatpush2.bf16.msra.mxu0 0
    %1117 = vmatprep.subr.bf16.mxu0 0
    %1118 = vmatpush2.bf16.msra.mxu0 0
    %1119 = vmatprep.subr.bf16.mxu0 0
    %1120 = vmatpush2.bf16.msra.mxu0 0
    %1121 = vmatprep.subr.bf16.mxu0 0
    %1122 = vmatpush2.bf16.msra.mxu0 0
    %1123 = vmatprep.subr.bf16.mxu0 0
    %1124 = vmatpush2.bf16.msra.mxu0 0
    %1125 = vmatprep.mubr.bf16.mxu0 0
    %1126 = vmatmul.mubr.bf16.gmra.mxu0 %v1092
    %v1127 = vpop.f32.mrf.mxu0
    %v1128 = vadd.f32 0.0, %v1127
    %v1129 = vpop.f32.mrf.mxu0
    %v1130 = vadd.f32 0.0, %v1129
    %v1131 = vpop.f32.mrf.mxu0
    %v1132 = vpop.f32.mrf.mxu0
    %1133 = vdwg.mxu0
    %1134 = vmatprep.subr.bf16.mxu0 0
    %1135 = vmatpush1.bf16.msra.mxu0 %v273
    %1136 = vmatprep.subr.bf16.mxu0 0
    %1137 = vmatpush1.bf16.msra.mxu0 %v270
    %1138 = vmatprep.subr.bf16.mxu0 0
    %1139 = vmatpush1.bf16.msra.mxu0 %v267
    %1140 = vmatprep.subr.bf16.mxu0 0
    %1141 = vmatpush1.bf16.msra.mxu0 %v264
    %1142 = vmatprep.subr.bf16.mxu0 0
    %1143 = vmatpush1.bf16.msra.mxu0 %v261
    %1144 = vmatprep.subr.bf16.mxu0 0
    %1145 = vmatpush1.bf16.msra.mxu0 %v258
    %1146 = vmatprep.subr.bf16.mxu0 0
    %1147 = vmatpush1.bf16.msra.mxu0 %v255
    %1148 = vmatprep.subr.bf16.mxu0 0
    %1149 = vmatpush1.bf16.msra.mxu0 %v252
    %1150 = vmatprep.subr.bf16.mxu0 0
    %1151 = vmatpush2.bf16.msra.mxu0 0
    %1152 = vmatprep.subr.bf16.mxu0 0
    %1153 = vmatpush2.bf16.msra.mxu0 0
    %1154 = vmatprep.subr.bf16.mxu0 0
    %1155 = vmatpush2.bf16.msra.mxu0 0
    %1156 = vmatprep.subr.bf16.mxu0 0
    %1157 = vmatpush2.bf16.msra.mxu0 0
    %1158 = vmatprep.subr.bf16.mxu0 0
    %1159 = vmatpush2.bf16.msra.mxu0 0
    %1160 = vmatprep.subr.bf16.mxu0 0
    %1161 = vmatpush2.bf16.msra.mxu0 0
    %1162 = vmatprep.subr.bf16.mxu0 0
    %1163 = vmatpush2.bf16.msra.mxu0 0
    %1164 = vmatprep.subr.bf16.mxu0 0
    %1165 = vmatpush2.bf16.msra.mxu0 0
    %1166 = vmatprep.mubr.bf16.mxu0 0
    %1167 = vmatmul.mubr.bf16.gmra.mxu0 %v1092
    %v1168 = vpop.f32.mrf.mxu0
    %v1169 = vadd.f32 0.0, %v1168
    %v1170 = vpop.f32.mrf.mxu0
    %v1171 = vpop.f32.mrf.mxu0
    %v1172 = vpop.f32.mrf.mxu0
    %1173 = vdwg.mxu0
    %v1174 = vadd.f32 %v1089, %v1128
    %v1175 = vadd.f32 %v1090, %v1130
    %v1176 = vxor.u32 %v1174, 2147483648
    %v1177 = vxor.u32 %v1175, 2147483648
    %v1178 = vmul.f32 %v1176, 1.442695
    %v1179 = vpow.pop %v1178
    %v1180 = vmul.f32 %v1177, 1.442695
    %v1181 = vpow.pop %v1180
    %v1182 = vadd.f32 %v1179, 1.0
    %v1183 = vadd.f32 %v1181, 1.0
    %v1184 = vrcp.pop %v1182
    %v1185 = vmul.f32 1.0, %v1184
    %v1186 = vrcp.pop %v1183
    %v1187 = vmul.f32 1.0, %v1186
    %v1188 = vadd.f32 %v1169, %v113
    %v1189 = vmul.f32 %v1185, %v1188
    %v1190 = vadd.f32 %v1091, %v1189
    %v1191 = vtanh.pop %v1190
    %v1192 = vsub.f32 1.0, %v1187
    %v1193 = vmul.f32 %v1192, %v1191
    %v1194 = vmul.f32 %v1187, %v1036
    %v1195 = vadd.f32 %v1193, %v1194
    %s1196 = sld [smem:[#allocation2 + $0x6]]
    %s1197 = sshra.s32 %s1196, 3
    %s1198 = sand.u32 %s1196, 7
    %s1199 = sshra.s32 %s1196, 3
    %s1200 = sand.u32 %s1196, 7
    %s1201 = smul.u32 %s1197, 3
    %s1202 = smul.u32 %s1201, 8
    %s1203 = sadd.s32 %s1202, %s1200
    %s1204 = scalar_lea.vmem [#allocation8], %s1203
    %v1205 = vld [vmem:[%s1204] ss:$8 sm:$0x7]
    %v1206 = vpack.c.bf16 %v1195, %v1195
    %1207 = vmatprep.subr.bf16.mxu0 %v272
    %1208 = vmatpush1.bf16.msra.mxu0 %v271
    %1209 = vmatprep.subr.bf16.mxu0 %v269
    %1210 = vmatpush1.bf16.msra.mxu0 %v268
    %1211 = vmatprep.subr.bf16.mxu0 %v266
    %1212 = vmatpush1.bf16.msra.mxu0 %v265
    %1213 = vmatprep.subr.bf16.mxu0 %v263
    %1214 = vmatpush1.bf16.msra.mxu0 %v262
    %1215 = vmatprep.subr.bf16.mxu0 %v260
    %1216 = vmatpush1.bf16.msra.mxu0 %v259
    %1217 = vmatprep.subr.bf16.mxu0 %v257
    %1218 = vmatpush1.bf16.msra.mxu0 %v256
    %1219 = vmatprep.subr.bf16.mxu0 %v254
    %1220 = vmatpush1.bf16.msra.mxu0 %v253
    %1221 = vmatprep.subr.bf16.mxu0 %v251
    %1222 = vmatpush1.bf16.msra.mxu0 %v250
    %1223 = vmatprep.subr.bf16.mxu0 0
    %1224 = vmatpush2.bf16.msra.mxu0 0
    %1225 = vmatprep.subr.bf16.mxu0 0
    %1226 = vmatpush2.bf16.msra.mxu0 0
    %1227 = vmatprep.subr.bf16.mxu0 0
    %1228 = vmatpush2.bf16.msra.mxu0 0
    %1229 = vmatprep.subr.bf16.mxu0 0
    %1230 = vmatpush2.bf16.msra.mxu0 0
    %1231 = vmatprep.subr.bf16.mxu0 0
    %1232 = vmatpush2.bf16.msra.mxu0 0
    %1233 = vmatprep.subr.bf16.mxu0 0
    %1234 = vmatpush2.bf16.msra.mxu0 0
    %1235 = vmatprep.subr.bf16.mxu0 0
    %1236 = vmatpush2.bf16.msra.mxu0 0
    %1237 = vmatprep.subr.bf16.mxu0 0
    %1238 = vmatpush2.bf16.msra.mxu0 0
    %1239 = vmatprep.mubr.bf16.mxu0 0
    %1240 = vmatmul.mubr.bf16.gmra.mxu0 %v1206
    %v1241 = vpop.f32.mrf.mxu0
    %v1242 = vadd.f32 0.0, %v1241
    %v1243 = vpop.f32.mrf.mxu0
    %v1244 = vadd.f32 0.0, %v1243
    %v1245 = vpop.f32.mrf.mxu0
    %v1246 = vpop.f32.mrf.mxu0
    %1247 = vdwg.mxu0
    %1248 = vmatprep.subr.bf16.mxu0 0
    %1249 = vmatpush1.bf16.msra.mxu0 %v273
    %1250 = vmatprep.subr.bf16.mxu0 0
    %1251 = vmatpush1.bf16.msra.mxu0 %v270
    %1252 = vmatprep.subr.bf16.mxu0 0
    %1253 = vmatpush1.bf16.msra.mxu0 %v267
    %1254 = vmatprep.subr.bf16.mxu0 0
    %1255 = vmatpush1.bf16.msra.mxu0 %v264
    %1256 = vmatprep.subr.bf16.mxu0 0
    %1257 = vmatpush1.bf16.msra.mxu0 %v261
    %1258 = vmatprep.subr.bf16.mxu0 0
    %1259 = vmatpush1.bf16.msra.mxu0 %v258
    %1260 = vmatprep.subr.bf16.mxu0 0
    %1261 = vmatpush1.bf16.msra.mxu0 %v255
    %1262 = vmatprep.subr.bf16.mxu0 0
    %1263 = vmatpush1.bf16.msra.mxu0 %v252
    %1264 = vmatprep.subr.bf16.mxu0 0
    %1265 = vmatpush2.bf16.msra.mxu0 0
    %1266 = vmatprep.subr.bf16.mxu0 0
    %1267 = vmatpush2.bf16.msra.mxu0 0
    %1268 = vmatprep.subr.bf16.mxu0 0
    %1269 = vmatpush2.bf16.msra.mxu0 0
    %1270 = vmatprep.subr.bf16.mxu0 0
    %1271 = vmatpush2.bf16.msra.mxu0 0
    %1272 = vmatprep.subr.bf16.mxu0 0
    %1273 = vmatpush2.bf16.msra.mxu0 0
    %1274 = vmatprep.subr.bf16.mxu0 0
    %1275 = vmatpush2.bf16.msra.mxu0 0
    %1276 = vmatprep.subr.bf16.mxu0 0
    %1277 = vmatpush2.bf16.msra.mxu0 0
    %1278 = vmatprep.subr.bf16.mxu0 0
    %1279 = vmatpush2.bf16.msra.mxu0 0
    %1280 = vmatprep.mubr.bf16.mxu0 0
    %1281 = vmatmul.mubr.bf16.gmra.mxu0 %v1206
    %v1282 = vpop.f32.mrf.mxu0
    %v1283 = vadd.f32 0.0, %v1282
    %v1284 = vpop.f32.mrf.mxu0
    %v1285 = vpop.f32.mrf.mxu0
    %v1286 = vpop.f32.mrf.mxu0
    %1287 = vdwg.mxu0
    %v1290 = vcombine.low %v1242, %v1244
    %v1292 = vunpack.c.l.s4 1966171168
    %v1293 = vunpack.c.0.s8 %v1292
    %v1294 = vlaneseq
    %v1295 = vshrl.u32 %v1294, 7
    %v1296 = vsub.s32 %v1293, %v1295
    %v1297 = vrot.slane %v1290, %v1296
    %v1299 = vunpack.c.l.s4 1966171168
    %v1300 = vunpack.c.0.s8 %v1299
    %v1301 = vlaneseq
    %v1302 = vshrl.u32 %v1301, 7
    %v1303 = vsub.s32 %v1300, %v1302
    %v1304 = vrot.slane %v1297, %v1303
    %v1306 = vadd.f32 %v1205, %v1304
    %v1307 = vxor.u32 %v1306, 2147483648
    %v1308 = vmul.f32 %v1307, 1.442695
    %v1309 = vpow.pop %v1308
    %v1310 = vadd.f32 %v1309, 1.0
    %v1311 = vrcp.pop %v1310
    %v1312 = vmul.f32 1.0, %v1311
    %v1313 = vadd.f32 %v1283, %v113
    %v1314 = vmul.f32 %v1312, %v1313
    %v1316 = vrot.slane %v1205, 2
    %v1318 = vadd.f32 %v1316, %v1314
    %v1319 = vtanh.pop %v1318
    %v1321 = vrot.slane %v1312, 1
    %v1323 = vsub.f32 1.0, %v1321
    %v1324 = vmul.f32 %v1323, %v1319
    %v1325 = vmul.f32 %v1321, %v1195
    %v1326 = vadd.f32 %v1324, %v1325
    %s1327 = sld [smem:[#allocation2 + $0x7]]
    %s1328 = sshra.s32 %s1327, 3
    %s1329 = sand.u32 %s1327, 7
    %s1330 = sshra.s32 %s1327, 3
    %s1331 = sand.u32 %s1327, 7
    %s1332 = smul.u32 %s1328, 3
    %s1333 = smul.u32 %s1332, 8
    %s1334 = sadd.s32 %s1333, %s1331
    %s1335 = scalar_lea.vmem [#allocation8], %s1334
    %v1336 = vld [vmem:[%s1335] ss:$8 sm:$0x7]
    %v1337 = vpack.c.bf16 %v1326, %v1326
    %1338 = vmatprep.subr.bf16.mxu0 %v272
    %1339 = vmatpush1.bf16.msra.mxu0 %v271
    %1340 = vmatprep.subr.bf16.mxu0 %v269
    %1341 = vmatpush1.bf16.msra.mxu0 %v268
    %1342 = vmatprep.subr.bf16.mxu0 %v266
    %1343 = vmatpush1.bf16.msra.mxu0 %v265
    %1344 = vmatprep.subr.bf16.mxu0 %v263
    %1345 = vmatpush1.bf16.msra.mxu0 %v262
    %1346 = vmatprep.subr.bf16.mxu0 %v260
    %1347 = vmatpush1.bf16.msra.mxu0 %v259
    %1348 = vmatprep.subr.bf16.mxu0 %v257
    %1349 = vmatpush1.bf16.msra.mxu0 %v256
    %1350 = vmatprep.subr.bf16.mxu0 %v254
    %1351 = vmatpush1.bf16.msra.mxu0 %v253
    %1352 = vmatprep.subr.bf16.mxu0 %v251
    %1353 = vmatpush1.bf16.msra.mxu0 %v250
    %1354 = vmatprep.subr.bf16.mxu0 0
    %1355 = vmatpush2.bf16.msra.mxu0 0
    %1356 = vmatprep.subr.bf16.mxu0 0
    %1357 = vmatpush2.bf16.msra.mxu0 0
    %1358 = vmatprep.subr.bf16.mxu0 0
    %1359 = vmatpush2.bf16.msra.mxu0 0
    %1360 = vmatprep.subr.bf16.mxu0 0
    %1361 = vmatpush2.bf16.msra.mxu0 0
    %1362 = vmatprep.subr.bf16.mxu0 0
    %1363 = vmatpush2.bf16.msra.mxu0 0
    %1364 = vmatprep.subr.bf16.mxu0 0
    %1365 = vmatpush2.bf16.msra.mxu0 0
    %1366 = vmatprep.subr.bf16.mxu0 0
    %1367 = vmatpush2.bf16.msra.mxu0 0
    %1368 = vmatprep.subr.bf16.mxu0 0
    %1369 = vmatpush2.bf16.msra.mxu0 0
    %1370 = vmatprep.mubr.bf16.mxu0 0
    %1371 = vmatmul.mubr.bf16.gmra.mxu0 %v1337
    %v1372 = vpop.f32.mrf.mxu0
    %v1373 = vadd.f32 0.0, %v1372
    %v1374 = vpop.f32.mrf.mxu0
    %v1375 = vadd.f32 0.0, %v1374
    %v1376 = vpop.f32.mrf.mxu0
    %v1377 = vpop.f32.mrf.mxu0
    %1378 = vdwg.mxu0
    %1379 = vmatprep.subr.bf16.mxu0 0
    %1380 = vmatpush1.bf16.msra.mxu0 %v273
    %1381 = vmatprep.subr.bf16.mxu0 0
    %1382 = vmatpush1.bf16.msra.mxu0 %v270
    %1383 = vmatprep.subr.bf16.mxu0 0
    %1384 = vmatpush1.bf16.msra.mxu0 %v267
    %1385 = vmatprep.subr.bf16.mxu0 0
    %1386 = vmatpush1.bf16.msra.mxu0 %v264
    %1387 = vmatprep.subr.bf16.mxu0 0
    %1388 = vmatpush1.bf16.msra.mxu0 %v261
    %1389 = vmatprep.subr.bf16.mxu0 0
    %1390 = vmatpush1.bf16.msra.mxu0 %v258
    %1391 = vmatprep.subr.bf16.mxu0 0
    %1392 = vmatpush1.bf16.msra.mxu0 %v255
    %1393 = vmatprep.subr.bf16.mxu0 0
    %1394 = vmatpush1.bf16.msra.mxu0 %v252
    %1395 = vmatprep.subr.bf16.mxu0 0
    %1396 = vmatpush2.bf16.msra.mxu0 0
    %1397 = vmatprep.subr.bf16.mxu0 0
    %1398 = vmatpush2.bf16.msra.mxu0 0
    %1399 = vmatprep.subr.bf16.mxu0 0
    %1400 = vmatpush2.bf16.msra.mxu0 0
    %1401 = vmatprep.subr.bf16.mxu0 0
    %1402 = vmatpush2.bf16.msra.mxu0 0
    %1403 = vmatprep.subr.bf16.mxu0 0
    %1404 = vmatpush2.bf16.msra.mxu0 0
    %1405 = vmatprep.subr.bf16.mxu0 0
    %1406 = vmatpush2.bf16.msra.mxu0 0
    %1407 = vmatprep.subr.bf16.mxu0 0
    %1408 = vmatpush2.bf16.msra.mxu0 0
    %1409 = vmatprep.subr.bf16.mxu0 0
    %1410 = vmatpush2.bf16.msra.mxu0 0
    %1411 = vmatprep.mubr.bf16.mxu0 0
    %1412 = vmatmul.mubr.bf16.gmra.mxu0 %v1337
    %v1413 = vpop.f32.mrf.mxu0
    %v1414 = vadd.f32 0.0, %v1413
    %v1415 = vpop.f32.mrf.mxu0
    %v1416 = vpop.f32.mrf.mxu0
    %v1417 = vpop.f32.mrf.mxu0
    %1418 = vdwg.mxu0
    %v1421 = vcombine.low %v1373, %v1375
    %v1423 = vunpack.c.l.s4 1966171168
    %v1424 = vunpack.c.0.s8 %v1423
    %v1425 = vlaneseq
    %v1426 = vshrl.u32 %v1425, 7
    %v1427 = vsub.s32 %v1424, %v1426
    %v1428 = vrot.slane %v1421, %v1427
    %v1430 = vunpack.c.l.s4 1966171168
    %v1431 = vunpack.c.0.s8 %v1430
    %v1432 = vlaneseq
    %v1433 = vshrl.u32 %v1432, 7
    %v1434 = vsub.s32 %v1431, %v1433
    %v1435 = vrot.slane %v1428, %v1434
    %v1437 = vadd.f32 %v1336, %v1435
    %v1438 = vxor.u32 %v1437, 2147483648
    %v1439 = vmul.f32 %v1438, 1.442695
    %v1440 = vpow.pop %v1439
    %v1441 = vadd.f32 %v1440, 1.0
    %v1442 = vrcp.pop %v1441
    %v1443 = vmul.f32 1.0, %v1442
    %v1444 = vadd.f32 %v1414, %v113
    %v1445 = vmul.f32 %v1443, %v1444
    %v1447 = vrot.slane %v1336, 2
    %v1449 = vadd.f32 %v1447, %v1445
    %v1450 = vtanh.pop %v1449
    %v1452 = vrot.slane %v1443, 1
    %v1454 = vsub.f32 1.0, %v1452
    %v1455 = vmul.f32 %v1454, %v1450
    %v1456 = vmul.f32 %v1452, %v1326
    %v1457 = vadd.f32 %v1455, %v1456
    %v1458 = vsel %vm166, %v1457, %v1195
    %v1459 = vld [vmem:[#allocation9 + $0xc0] sm:$0xff]
    %v1460 = vld [vmem:[#allocation9 + $0xc8] sm:$0xf]
    %v1461 = vld [vmem:[#allocation9 + $0xcc] sm:$0xff]
    %v1462 = vld [vmem:[#allocation9 + $0xd4] sm:$0xf]
    %v1463 = vld [vmem:[#allocation9 + $0xd8] sm:$0xff]
    %v1464 = vld [vmem:[#allocation9 + $0xe0] sm:$0xf]
    %v1465 = vld [vmem:[#allocation9 + $0xe4] sm:$0xff]
    %v1466 = vld [vmem:[#allocation9 + $0xec] sm:$0xf]
    %v1467 = vld [vmem:[#allocation9 + $0xf0] sm:$0xff]
    %v1468 = vld [vmem:[#allocation9 + $0xf8] sm:$0xf]
    %v1469 = vld [vmem:[#allocation9 + $0xfc] sm:$0xff]
    %v1470 = vld [vmem:[#allocation9 + $0x104] sm:$0xf]
    %v1471 = vld [vmem:[#allocation9 + $0x108] sm:$0xff]
    %v1472 = vld [vmem:[#allocation9 + $0x110] sm:$0xf]
    %v1473 = vld [vmem:[#allocation9 + $0x114] sm:$0xff]
    %v1474 = vld [vmem:[#allocation9 + $0x11c] sm:$0xf]
    %v1475 = vld [vmem:[#allocation9 + $0x120] sm:$0xff]
    %v1476 = vld [vmem:[#allocation9 + $0x128] sm:$0xf]
    %v1477 = vld [vmem:[#allocation9 + $0x12c] sm:$0xff]
    %v1478 = vld [vmem:[#allocation9 + $0x134] sm:$0xf]
    %v1479 = vld [vmem:[#allocation9 + $0x138] sm:$0xff]
    %v1480 = vld [vmem:[#allocation9 + $0x140] sm:$0xf]
    %v1481 = vld [vmem:[#allocation9 + $0x144] sm:$0xff]
    %v1482 = vld [vmem:[#allocation9 + $0x14c] sm:$0xf]
    %v1483 = vld [vmem:[#allocation9 + $0x150] sm:$0xff]
    %v1484 = vld [vmem:[#allocation9 + $0x158] sm:$0xf]
    %v1485 = vld [vmem:[#allocation9 + $0x15c] sm:$0xff]
    %v1486 = vld [vmem:[#allocation9 + $0x164] sm:$0xf]
    %v1487 = vld [vmem:[#allocation9 + $0x168] sm:$0xff]
    %v1488 = vld [vmem:[#allocation9 + $0x170] sm:$0xf]
    %v1489 = vld [vmem:[#allocation9 + $0x174] sm:$0xff]
    %v1490 = vld [vmem:[#allocation9 + $0x17c] sm:$0xf]
    %v1491 = vld [vmem:[#allocation9 + $0x180] sm:$0xff]
    %v1492 = vld [vmem:[#allocation9 + $0x188] sm:$0xf]
    %v1493 = vld [vmem:[#allocation9 + $0x18c] sm:$0xff]
    %v1494 = vld [vmem:[#allocation9 + $0x194] sm:$0xf]
    %v1495 = vld [vmem:[#allocation9 + $0x198] sm:$0xff]
    %v1496 = vld [vmem:[#allocation9 + $0x1a0] sm:$0xf]
    %v1497 = vld [vmem:[#allocation9 + $0x1a4] sm:$0xff]
    %v1498 = vld [vmem:[#allocation9 + $0x1ac] sm:$0xf]
    %v1499 = vld [vmem:[#allocation9 + $0x1b0] sm:$0xff]
    %v1500 = vld [vmem:[#allocation9 + $0x1b8] sm:$0xf]
    %v1501 = vld [vmem:[#allocation9 + $0x1bc] sm:$0xff]
    %v1502 = vld [vmem:[#allocation9 + $0x1c4] sm:$0xf]
    %v1503 = vld [vmem:[#allocation9 + $0x1c8] sm:$0xff]
    %v1504 = vld [vmem:[#allocation9 + $0x1d0] sm:$0xf]
    %v1505 = vld [vmem:[#allocation9 + $0x1d4] sm:$0xff]
    %v1506 = vld [vmem:[#allocation9 + $0x1dc] sm:$0xf]
    %v1507 = vld [vmem:[#allocation9 + $0x1e0] sm:$0xff]
    %v1508 = vld [vmem:[#allocation9 + $0x1e8] sm:$0xf]
    %v1509 = vld [vmem:[#allocation9 + $0x1ec] sm:$0xff]
    %v1510 = vld [vmem:[#allocation9 + $0x1f4] sm:$0xf]
    %v1511 = vld [vmem:[#allocation9 + $0x1f8] sm:$0xff]
    %v1512 = vld [vmem:[#allocation9 + $0x200] sm:$0xf]
    %v1513 = vld [vmem:[#allocation9 + $0x204] sm:$0xff]
    %v1514 = vld [vmem:[#allocation9 + $0x20c] sm:$0xf]
    %v1515 = vld [vmem:[#allocation9 + $0x210] sm:$0xff]
    %v1516 = vld [vmem:[#allocation9 + $0x218] sm:$0xf]
    %v1517 = vld [vmem:[#allocation9 + $0x21c] sm:$0xff]
    %v1518 = vld [vmem:[#allocation9 + $0x224] sm:$0xf]
    %v1519 = vld [vmem:[#allocation9 + $0x228] sm:$0xff]
    %v1520 = vld [vmem:[#allocation9 + $0x230] sm:$0xf]
    %v1521 = vld [vmem:[#allocation9 + $0x234] sm:$0xff]
    %v1522 = vld [vmem:[#allocation9 + $0x23c] sm:$0xf]
    %s1523 = scalar_lea.vmem %s6, 1
    %v1524 = vld [vmem:[%s1523] ss:$8 sm:$0x7]
    %v1525 = vld [vmem:[%s6 + $0x2] ss:$0 sm:$0xff]
    %v1526 = vpack.c.bf16 %v1458, %v1458
    %v1528 = vlaneseq
    %v1529 = vshrl.u32 %v1528, 7
    %v1530 = vsub.s32 0, %v1529
    %v1531 = vrot.slane %v1524, %v1530
    %v1532 = vlaneseq
    %v1533 = vshrl.u32 %v1532, 7
    %v1534 = vsub.s32 1, %v1533
    %v1535 = vrot.slane %v1524, %v1534
    %v1536 = vlaneseq
    %v1537 = vshrl.u32 %v1536, 7
    %v1538 = vsub.s32 2, %v1537
    %v1539 = vrot.slane %v1524, %v1538
    %v1575 = vunpack.c.l.b16 %v1459
    %v1576 = vunpack.c.h.b16 %v1459
    %v1577 = vunpack.c.l.b16 %v1460
    %v1578 = vunpack.c.l.b16 %v1461
    %v1579 = vunpack.c.h.b16 %v1461
    %v1580 = vunpack.c.l.b16 %v1462
    %v1581 = vunpack.c.l.b16 %v1463
    %v1582 = vunpack.c.h.b16 %v1463
    %v1583 = vunpack.c.l.b16 %v1464
    %v1584 = vunpack.c.l.b16 %v1465
    %v1585 = vunpack.c.h.b16 %v1465
    %v1586 = vunpack.c.l.b16 %v1466
    %v1587 = vunpack.c.l.b16 %v1467
    %v1588 = vunpack.c.h.b16 %v1467
    %v1589 = vunpack.c.l.b16 %v1468
    %v1590 = vunpack.c.l.b16 %v1469
    %v1591 = vunpack.c.h.b16 %v1469
    %v1592 = vunpack.c.l.b16 %v1470
    %v1593 = vunpack.c.l.b16 %v1471
    %v1594 = vunpack.c.h.b16 %v1471
    %v1595 = vunpack.c.l.b16 %v1472
    %v1596 = vunpack.c.l.b16 %v1473
    %v1597 = vunpack.c.h.b16 %v1473
    %v1598 = vunpack.c.l.b16 %v1474
    %v1599 = vunpack.c.l.b16 %v1475
    %v1600 = vunpack.c.h.b16 %v1475
    %v1601 = vunpack.c.l.b16 %v1476
    %v1602 = vunpack.c.l.b16 %v1477
    %v1603 = vunpack.c.h.b16 %v1477
    %v1604 = vunpack.c.l.b16 %v1478
    %v1605 = vunpack.c.l.b16 %v1479
    %v1606 = vunpack.c.h.b16 %v1479
    %v1607 = vunpack.c.l.b16 %v1480
    %v1608 = vunpack.c.l.b16 %v1481
    %v1609 = vunpack.c.h.b16 %v1481
    %v1610 = vunpack.c.l.b16 %v1482
    %v1611 = vunpack.c.l.b16 %v1483
    %v1612 = vunpack.c.h.b16 %v1483
    %v1613 = vunpack.c.l.b16 %v1484
    %v1614 = vunpack.c.l.b16 %v1485
    %v1615 = vunpack.c.h.b16 %v1485
    %v1616 = vunpack.c.l.b16 %v1486
    %v1617 = vunpack.c.l.b16 %v1487
    %v1618 = vunpack.c.h.b16 %v1487
    %v1619 = vunpack.c.l.b16 %v1488
    %v1620 = vunpack.c.l.b16 %v1489
    %v1621 = vunpack.c.h.b16 %v1489
    %v1622 = vunpack.c.l.b16 %v1490
    %v1623 = vpack.c.b16 %v1578, %v1575
    %v1624 = vpack.c.b16 %v1579, %v1576
    %v1625 = vpack.c.b16 %v1580, %v1577
    %v1626 = vpack.c.b16 %v1584, %v1581
    %v1627 = vpack.c.b16 %v1585, %v1582
    %v1628 = vpack.c.b16 %v1586, %v1583
    %v1629 = vpack.c.b16 %v1590, %v1587
    %v1630 = vpack.c.b16 %v1591, %v1588
    %v1631 = vpack.c.b16 %v1592, %v1589
    %v1632 = vpack.c.b16 %v1596, %v1593
    %v1633 = vpack.c.b16 %v1597, %v1594
    %v1634 = vpack.c.b16 %v1598, %v1595
    %v1635 = vpack.c.b16 %v1602, %v1599
    %v1636 = vpack.c.b16 %v1603, %v1600
    %v1637 = vpack.c.b16 %v1604, %v1601
    %v1638 = vpack.c.b16 %v1608, %v1605
    %v1639 = vpack.c.b16 %v1609, %v1606
    %v1640 = vpack.c.b16 %v1610, %v1607
    %v1641 = vpack.c.b16 %v1614, %v1611
    %v1642 = vpack.c.b16 %v1615, %v1612
    %v1643 = vpack.c.b16 %v1616, %v1613
    %v1644 = vpack.c.b16 %v1620, %v1617
    %v1645 = vpack.c.b16 %v1621, %v1618
    %v1646 = vpack.c.b16 %v1622, %v1619
    %1671 = vmatprep.subr.bf16.mxu0 %v1645
    %1672 = vmatpush1.bf16.msra.mxu0 %v1644
    %1673 = vmatprep.subr.bf16.mxu0 %v1642
    %1674 = vmatpush1.bf16.msra.mxu0 %v1641
    %1675 = vmatprep.subr.bf16.mxu0 %v1639
    %1676 = vmatpush1.bf16.msra.mxu0 %v1638
    %1677 = vmatprep.subr.bf16.mxu0 %v1636
    %1678 = vmatpush1.bf16.msra.mxu0 %v1635
    %1679 = vmatprep.subr.bf16.mxu0 %v1633
    %1680 = vmatpush1.bf16.msra.mxu0 %v1632
    %1681 = vmatprep.subr.bf16.mxu0 %v1630
    %1682 = vmatpush1.bf16.msra.mxu0 %v1629
    %1683 = vmatprep.subr.bf16.mxu0 %v1627
    %1684 = vmatpush1.bf16.msra.mxu0 %v1626
    %1685 = vmatprep.subr.bf16.mxu0 %v1624
    %1686 = vmatpush1.bf16.msra.mxu0 %v1623
    %1687 = vmatprep.subr.bf16.mxu0 0
    %1688 = vmatpush2.bf16.msra.mxu0 0
    %1689 = vmatprep.subr.bf16.mxu0 0
    %1690 = vmatpush2.bf16.msra.mxu0 0
    %1691 = vmatprep.subr.bf16.mxu0 0
    %1692 = vmatpush2.bf16.msra.mxu0 0
    %1693 = vmatprep.subr.bf16.mxu0 0
    %1694 = vmatpush2.bf16.msra.mxu0 0
    %1695 = vmatprep.subr.bf16.mxu0 0
    %1696 = vmatpush2.bf16.msra.mxu0 0
    %1697 = vmatprep.subr.bf16.mxu0 0
    %1698 = vmatpush2.bf16.msra.mxu0 0
    %1699 = vmatprep.subr.bf16.mxu0 0
    %1700 = vmatpush2.bf16.msra.mxu0 0
    %1701 = vmatprep.subr.bf16.mxu0 0
    %1702 = vmatpush2.bf16.msra.mxu0 0
    %1703 = vmatprep.mubr.bf16.mxu0 0
    %1704 = vmatmul.mubr.bf16.gmra.mxu0 %v1526
    %v1705 = vpop.f32.mrf.mxu0
    %v1706 = vadd.f32 %v1531, %v1705
    %v1707 = vpop.f32.mrf.mxu0
    %v1708 = vadd.f32 %v1535, %v1707
    %v1709 = vpop.f32.mrf.mxu0
    %v1710 = vpop.f32.mrf.mxu0
    %1711 = vdwg.mxu0
    %1712 = vmatprep.subr.bf16.mxu0 0
    %1713 = vmatpush1.bf16.msra.mxu0 %v1646
    %1714 = vmatprep.subr.bf16.mxu0 0
    %1715 = vmatpush1.bf16.msra.mxu0 %v1643
    %1716 = vmatprep.subr.bf16.mxu0 0
    %1717 = vmatpush1.bf16.msra.mxu0 %v1640
    %1718 = vmatprep.subr.bf16.mxu0 0
    %1719 = vmatpush1.bf16.msra.mxu0 %v1637
    %1720 = vmatprep.subr.bf16.mxu0 0
    %1721 = vmatpush1.bf16.msra.mxu0 %v1634
    %1722 = vmatprep.subr.bf16.mxu0 0
    %1723 = vmatpush1.bf16.msra.mxu0 %v1631
    %1724 = vmatprep.subr.bf16.mxu0 0
    %1725 = vmatpush1.bf16.msra.mxu0 %v1628
    %1726 = vmatprep.subr.bf16.mxu0 0
    %1727 = vmatpush1.bf16.msra.mxu0 %v1625
    %1728 = vmatprep.subr.bf16.mxu0 0
    %1729 = vmatpush2.bf16.msra.mxu0 0
    %1730 = vmatprep.subr.bf16.mxu0 0
    %1731 = vmatpush2.bf16.msra.mxu0 0
    %1732 = vmatprep.subr.bf16.mxu0 0
    %1733 = vmatpush2.bf16.msra.mxu0 0
    %1734 = vmatprep.subr.bf16.mxu0 0
    %1735 = vmatpush2.bf16.msra.mxu0 0
    %1736 = vmatprep.subr.bf16.mxu0 0
    %1737 = vmatpush2.bf16.msra.mxu0 0
    %1738 = vmatprep.subr.bf16.mxu0 0
    %1739 = vmatpush2.bf16.msra.mxu0 0
    %1740 = vmatprep.subr.bf16.mxu0 0
    %1741 = vmatpush2.bf16.msra.mxu0 0
    %1742 = vmatprep.subr.bf16.mxu0 0
    %1743 = vmatpush2.bf16.msra.mxu0 0
    %1744 = vmatprep.mubr.bf16.mxu0 0
    %1745 = vmatmul.mubr.bf16.gmra.mxu0 %v1526
    %v1746 = vpop.f32.mrf.mxu0
    %v1747 = vadd.f32 %v1539, %v1746
    %v1748 = vpop.f32.mrf.mxu0
    %v1749 = vpop.f32.mrf.mxu0
    %v1750 = vpop.f32.mrf.mxu0
    %1751 = vdwg.mxu0
    %v1784 = vunpack.c.l.b16 %v1491
    %v1785 = vunpack.c.h.b16 %v1491
    %v1786 = vunpack.c.l.b16 %v1492
    %v1787 = vunpack.c.l.b16 %v1493
    %v1788 = vunpack.c.h.b16 %v1493
    %v1789 = vunpack.c.l.b16 %v1494
    %v1790 = vunpack.c.l.b16 %v1495
    %v1791 = vunpack.c.h.b16 %v1495
    %v1792 = vunpack.c.l.b16 %v1496
    %v1793 = vunpack.c.l.b16 %v1497
    %v1794 = vunpack.c.h.b16 %v1497
    %v1795 = vunpack.c.l.b16 %v1498
    %v1796 = vunpack.c.l.b16 %v1499
    %v1797 = vunpack.c.h.b16 %v1499
    %v1798 = vunpack.c.l.b16 %v1500
    %v1799 = vunpack.c.l.b16 %v1501
    %v1800 = vunpack.c.h.b16 %v1501
    %v1801 = vunpack.c.l.b16 %v1502
    %v1802 = vunpack.c.l.b16 %v1503
    %v1803 = vunpack.c.h.b16 %v1503
    %v1804 = vunpack.c.l.b16 %v1504
    %v1805 = vunpack.c.l.b16 %v1505
    %v1806 = vunpack.c.h.b16 %v1505
    %v1807 = vunpack.c.l.b16 %v1506
    %v1808 = vunpack.c.l.b16 %v1507
    %v1809 = vunpack.c.h.b16 %v1507
    %v1810 = vunpack.c.l.b16 %v1508
    %v1811 = vunpack.c.l.b16 %v1509
    %v1812 = vunpack.c.h.b16 %v1509
    %v1813 = vunpack.c.l.b16 %v1510
    %v1814 = vunpack.c.l.b16 %v1511
    %v1815 = vunpack.c.h.b16 %v1511
    %v1816 = vunpack.c.l.b16 %v1512
    %v1817 = vunpack.c.l.b16 %v1513
    %v1818 = vunpack.c.h.b16 %v1513
    %v1819 = vunpack.c.l.b16 %v1514
    %v1820 = vunpack.c.l.b16 %v1515
    %v1821 = vunpack.c.h.b16 %v1515
    %v1822 = vunpack.c.l.b16 %v1516
    %v1823 = vunpack.c.l.b16 %v1517
    %v1824 = vunpack.c.h.b16 %v1517
    %v1825 = vunpack.c.l.b16 %v1518
    %v1826 = vunpack.c.l.b16 %v1519
    %v1827 = vunpack.c.h.b16 %v1519
    %v1828 = vunpack.c.l.b16 %v1520
    %v1829 = vunpack.c.l.b16 %v1521
    %v1830 = vunpack.c.h.b16 %v1521
    %v1831 = vunpack.c.l.b16 %v1522
    %v1832 = vpack.c.b16 %v1787, %v1784
    %v1833 = vpack.c.b16 %v1788, %v1785
    %v1834 = vpack.c.b16 %v1789, %v1786
    %v1835 = vpack.c.b16 %v1793, %v1790
    %v1836 = vpack.c.b16 %v1794, %v1791
    %v1837 = vpack.c.b16 %v1795, %v1792
    %v1838 = vpack.c.b16 %v1799, %v1796
    %v1839 = vpack.c.b16 %v1800, %v1797
    %v1840 = vpack.c.b16 %v1801, %v1798
    %v1841 = vpack.c.b16 %v1805, %v1802
    %v1842 = vpack.c.b16 %v1806, %v1803
    %v1843 = vpack.c.b16 %v1807, %v1804
    %v1844 = vpack.c.b16 %v1811, %v1808
    %v1845 = vpack.c.b16 %v1812, %v1809
    %v1846 = vpack.c.b16 %v1813, %v1810
    %v1847 = vpack.c.b16 %v1817, %v1814
    %v1848 = vpack.c.b16 %v1818, %v1815
    %v1849 = vpack.c.b16 %v1819, %v1816
    %v1850 = vpack.c.b16 %v1823, %v1820
    %v1851 = vpack.c.b16 %v1824, %v1821
    %v1852 = vpack.c.b16 %v1825, %v1822
    %v1853 = vpack.c.b16 %v1829, %v1826
    %v1854 = vpack.c.b16 %v1830, %v1827
    %v1855 = vpack.c.b16 %v1831, %v1828
    %1880 = vmatprep.subr.bf16.mxu0 %v1854
    %1881 = vmatpush1.bf16.msra.mxu0 %v1853
    %1882 = vmatprep.subr.bf16.mxu0 %v1851
    %1883 = vmatpush1.bf16.msra.mxu0 %v1850
    %1884 = vmatprep.subr.bf16.mxu0 %v1848
    %1885 = vmatpush1.bf16.msra.mxu0 %v1847
    %1886 = vmatprep.subr.bf16.mxu0 %v1845
    %1887 = vmatpush1.bf16.msra.mxu0 %v1844
    %1888 = vmatprep.subr.bf16.mxu0 %v1842
    %1889 = vmatpush1.bf16.msra.mxu0 %v1841
    %1890 = vmatprep.subr.bf16.mxu0 %v1839
    %1891 = vmatpush1.bf16.msra.mxu0 %v1838
    %1892 = vmatprep.subr.bf16.mxu0 %v1836
    %1893 = vmatpush1.bf16.msra.mxu0 %v1835
    %1894 = vmatprep.subr.bf16.mxu0 %v1833
    %1895 = vmatpush1.bf16.msra.mxu0 %v1832
    %1896 = vmatprep.subr.bf16.mxu0 0
    %1897 = vmatpush2.bf16.msra.mxu0 0
    %1898 = vmatprep.subr.bf16.mxu0 0
    %1899 = vmatpush2.bf16.msra.mxu0 0
    %1900 = vmatprep.subr.bf16.mxu0 0
    %1901 = vmatpush2.bf16.msra.mxu0 0
    %1902 = vmatprep.subr.bf16.mxu0 0
    %1903 = vmatpush2.bf16.msra.mxu0 0
    %1904 = vmatprep.subr.bf16.mxu0 0
    %1905 = vmatpush2.bf16.msra.mxu0 0
    %1906 = vmatprep.subr.bf16.mxu0 0
    %1907 = vmatpush2.bf16.msra.mxu0 0
    %1908 = vmatprep.subr.bf16.mxu0 0
    %1909 = vmatpush2.bf16.msra.mxu0 0
    %1910 = vmatprep.subr.bf16.mxu0 0
    %1911 = vmatpush2.bf16.msra.mxu0 0
    %1912 = vmatprep.mubr.bf16.mxu0 0
    %1913 = vmatmul.mubr.bf16.gmra.mxu0 0
    %v1914 = vpop.f32.mrf.mxu0
    %v1915 = vadd.f32 0.0, %v1914
    %v1916 = vpop.f32.mrf.mxu0
    %v1917 = vadd.f32 0.0, %v1916
    %v1918 = vpop.f32.mrf.mxu0
    %v1919 = vpop.f32.mrf.mxu0
    %1920 = vdwg.mxu0
    %1921 = vmatprep.subr.bf16.mxu0 0
    %1922 = vmatpush1.bf16.msra.mxu0 %v1855
    %1923 = vmatprep.subr.bf16.mxu0 0
    %1924 = vmatpush1.bf16.msra.mxu0 %v1852
    %1925 = vmatprep.subr.bf16.mxu0 0
    %1926 = vmatpush1.bf16.msra.mxu0 %v1849
    %1927 = vmatprep.subr.bf16.mxu0 0
    %1928 = vmatpush1.bf16.msra.mxu0 %v1846
    %1929 = vmatprep.subr.bf16.mxu0 0
    %1930 = vmatpush1.bf16.msra.mxu0 %v1843
    %1931 = vmatprep.subr.bf16.mxu0 0
    %1932 = vmatpush1.bf16.msra.mxu0 %v1840
    %1933 = vmatprep.subr.bf16.mxu0 0
    %1934 = vmatpush1.bf16.msra.mxu0 %v1837
    %1935 = vmatprep.subr.bf16.mxu0 0
    %1936 = vmatpush1.bf16.msra.mxu0 %v1834
    %1937 = vmatprep.subr.bf16.mxu0 0
    %1938 = vmatpush2.bf16.msra.mxu0 0
    %1939 = vmatprep.subr.bf16.mxu0 0
    %1940 = vmatpush2.bf16.msra.mxu0 0
    %1941 = vmatprep.subr.bf16.mxu0 0
    %1942 = vmatpush2.bf16.msra.mxu0 0
    %1943 = vmatprep.subr.bf16.mxu0 0
    %1944 = vmatpush2.bf16.msra.mxu0 0
    %1945 = vmatprep.subr.bf16.mxu0 0
    %1946 = vmatpush2.bf16.msra.mxu0 0
    %1947 = vmatprep.subr.bf16.mxu0 0
    %1948 = vmatpush2.bf16.msra.mxu0 0
    %1949 = vmatprep.subr.bf16.mxu0 0
    %1950 = vmatpush2.bf16.msra.mxu0 0
    %1951 = vmatprep.subr.bf16.mxu0 0
    %1952 = vmatpush2.bf16.msra.mxu0 0
    %1953 = vmatprep.mubr.bf16.mxu0 0
    %1954 = vmatmul.mubr.bf16.gmra.mxu0 0
    %v1955 = vpop.f32.mrf.mxu0
    %v1956 = vadd.f32 0.0, %v1955
    %v1957 = vpop.f32.mrf.mxu0
    %v1958 = vpop.f32.mrf.mxu0
    %v1959 = vpop.f32.mrf.mxu0
    %1960 = vdwg.mxu0
    %v1961 = vadd.f32 %v1706, %v1915
    %v1962 = vadd.f32 %v1708, %v1917
    %v1963 = vxor.u32 %v1961, 2147483648
    %v1964 = vxor.u32 %v1962, 2147483648
    %v1965 = vmul.f32 %v1963, 1.442695
    %v1966 = vpow.pop %v1965
    %v1967 = vmul.f32 %v1964, 1.442695
    %v1968 = vpow.pop %v1967
    %v1969 = vadd.f32 %v1966, 1.0
    %v1970 = vadd.f32 %v1968, 1.0
    %v1971 = vrcp.pop %v1969
    %v1972 = vmul.f32 1.0, %v1971
    %v1973 = vrcp.pop %v1970
    %v1974 = vmul.f32 1.0, %v1973
    %v1975 = vadd.f32 %v1956, %v1525
    %v1976 = vmul.f32 %v1972, %v1975
    %v1977 = vadd.f32 %v1747, %v1976
    %v1978 = vtanh.pop %v1977
    %v1979 = vsub.f32 1.0, %v1974
    %v1980 = vmul.f32 %v1979, %v1978
    %v1981 = vmul.f32 %v1974, 0.0
    %v1982 = vadd.f32 %v1980, %v1981
    %v1983 = vpack.c.bf16 %v1982, %v1982
    %1984 = vmatprep.subr.bf16.mxu0 %v1854
    %1985 = vmatpush1.bf16.msra.mxu0 %v1853
    %1986 = vmatprep.subr.bf16.mxu0 %v1851
    %1987 = vmatpush1.bf16.msra.mxu0 %v1850
    %1988 = vmatprep.subr.bf16.mxu0 %v1848
    %1989 = vmatpush1.bf16.msra.mxu0 %v1847
    %1990 = vmatprep.subr.bf16.mxu0 %v1845
    %1991 = vmatpush1.bf16.msra.mxu0 %v1844
    %1992 = vmatprep.subr.bf16.mxu0 %v1842
    %1993 = vmatpush1.bf16.msra.mxu0 %v1841
    %1994 = vmatprep.subr.bf16.mxu0 %v1839
    %1995 = vmatpush1.bf16.msra.mxu0 %v1838
    %1996 = vmatprep.subr.bf16.mxu0 %v1836
    %1997 = vmatpush1.bf16.msra.mxu0 %v1835
    %1998 = vmatprep.subr.bf16.mxu0 %v1833
    %1999 = vmatpush1.bf16.msra.mxu0 %v1832
    %2000 = vmatprep.subr.bf16.mxu0 0
    %2001 = vmatpush2.bf16.msra.mxu0 0
    %2002 = vmatprep.subr.bf16.mxu0 0
    %2003 = vmatpush2.bf16.msra.mxu0 0
    %2004 = vmatprep.subr.bf16.mxu0 0
    %2005 = vmatpush2.bf16.msra.mxu0 0
    %2006 = vmatprep.subr.bf16.mxu0 0
    %2007 = vmatpush2.bf16.msra.mxu0 0
    %2008 = vmatprep.subr.bf16.mxu0 0
    %2009 = vmatpush2.bf16.msra.mxu0 0
    %2010 = vmatprep.subr.bf16.mxu0 0
    %2011 = vmatpush2.bf16.msra.mxu0 0
    %2012 = vmatprep.subr.bf16.mxu0 0
    %2013 = vmatpush2.bf16.msra.mxu0 0
    %2014 = vmatprep.subr.bf16.mxu0 0
    %2015 = vmatpush2.bf16.msra.mxu0 0
    %2016 = vmatprep.mubr.bf16.mxu0 0
    %2017 = vmatmul.mubr.bf16.gmra.mxu0 %v1983
    %v2018 = vpop.f32.mrf.mxu0
    %v2019 = vadd.f32 0.0, %v2018
    %v2020 = vpop.f32.mrf.mxu0
    %v2021 = vadd.f32 0.0, %v2020
    %v2022 = vpop.f32.mrf.mxu0
    %v2023 = vpop.f32.mrf.mxu0
    %2024 = vdwg.mxu0
    %2025 = vmatprep.subr.bf16.mxu0 0
    %2026 = vmatpush1.bf16.msra.mxu0 %v1855
    %2027 = vmatprep.subr.bf16.mxu0 0
    %2028 = vmatpush1.bf16.msra.mxu0 %v1852
    %2029 = vmatprep.subr.bf16.mxu0 0
    %2030 = vmatpush1.bf16.msra.mxu0 %v1849
    %2031 = vmatprep.subr.bf16.mxu0 0
    %2032 = vmatpush1.bf16.msra.mxu0 %v1846
    %2033 = vmatprep.subr.bf16.mxu0 0
    %2034 = vmatpush1.bf16.msra.mxu0 %v1843
    %2035 = vmatprep.subr.bf16.mxu0 0
    %2036 = vmatpush1.bf16.msra.mxu0 %v1840
    %2037 = vmatprep.subr.bf16.mxu0 0
    %2038 = vmatpush1.bf16.msra.mxu0 %v1837
    %2039 = vmatprep.subr.bf16.mxu0 0
    %2040 = vmatpush1.bf16.msra.mxu0 %v1834
    %2041 = vmatprep.subr.bf16.mxu0 0
    %2042 = vmatpush2.bf16.msra.mxu0 0
    %2043 = vmatprep.subr.bf16.mxu0 0
    %2044 = vmatpush2.bf16.msra.mxu0 0
    %2045 = vmatprep.subr.bf16.mxu0 0
    %2046 = vmatpush2.bf16.msra.mxu0 0
    %2047 = vmatprep.subr.bf16.mxu0 0
    %2048 = vmatpush2.bf16.msra.mxu0 0
    %2049 = vmatprep.subr.bf16.mxu0 0
    %2050 = vmatpush2.bf16.msra.mxu0 0
    %2051 = vmatprep.subr.bf16.mxu0 0
    %2052 = vmatpush2.bf16.msra.mxu0 0
    %2053 = vmatprep.subr.bf16.mxu0 0
    %2054 = vmatpush2.bf16.msra.mxu0 0
    %2055 = vmatprep.subr.bf16.mxu0 0
    %2056 = vmatpush2.bf16.msra.mxu0 0
    %2057 = vmatprep.mubr.bf16.mxu0 0
    %2058 = vmatmul.mubr.bf16.gmra.mxu0 %v1983
    %v2059 = vpop.f32.mrf.mxu0
    %v2060 = vadd.f32 0.0, %v2059
    %v2061 = vpop.f32.mrf.mxu0
    %v2062 = vpop.f32.mrf.mxu0
    %v2063 = vpop.f32.mrf.mxu0
    %2064 = vdwg.mxu0
    %v2067 = vrot.slane %v2019, 7
    %v2068 = vrot.slane %v2021, 7
    %v2071 = vadd.f32 %v1706, %v2067
    %v2072 = vadd.f32 %v1708, %v2068
    %v2073 = vxor.u32 %v2071, 2147483648
    %v2074 = vxor.u32 %v2072, 2147483648
    %v2075 = vmul.f32 %v2073, 1.442695
    %v2076 = vpow.pop %v2075
    %v2077 = vmul.f32 %v2074, 1.442695
    %v2078 = vpow.pop %v2077
    %v2079 = vadd.f32 %v2076, 1.0
    %v2080 = vadd.f32 %v2078, 1.0
    %v2081 = vrcp.pop %v2079
    %v2082 = vmul.f32 1.0, %v2081
    %v2083 = vrcp.pop %v2080
    %v2084 = vmul.f32 1.0, %v2083
    %v2085 = vadd.f32 %v2060, %v1525
    %v2087 = vrot.slane %v2085, 7
    %v2089 = vmul.f32 %v2082, %v2087
    %v2090 = vadd.f32 %v1747, %v2089
    %v2091 = vtanh.pop %v2090
    %v2092 = vsub.f32 1.0, %v2084
    %v2093 = vmul.f32 %v2092, %v2091
    %v2095 = vrot.slane %v1982, 7
    %v2097 = vmul.f32 %v2084, %v2095
    %v2098 = vadd.f32 %v2093, %v2097
    %v2099 = vld [vmem:[%s6 + $0x3] ss:$0 sm:$0xff]
    %v2100 = vld [vmem:[%s6 + $0x4] ss:$0 sm:$0xff]
    %v2101 = vld [vmem:[%s4] sm:$0xff]
    %v2102 = vld [vmem:[%s4 + $0x8] sm:$0xff]
    %v2103 = vld [vmem:[%s4 + $0x10] sm:$0xff]
    %v2104 = vld [vmem:[%s4 + $0x18] sm:$0xff]
    %v2105 = vld [vmem:[%s4 + $0x20] sm:$0xff]
    %v2106 = vld [vmem:[%s4 + $0x28] sm:$0xff]
    %v2107 = vld [vmem:[%s4 + $0x30] sm:$0xff]
    %v2108 = vld [vmem:[%s4 + $0x38] sm:$0xff]
    %v2109 = vld [vmem:[%s4 + $0x40] sm:$0xff]
    %v2110 = vld [vmem:[%s4 + $0x48] sm:$0xff]
    %v2111 = vld [vmem:[%s4 + $0x50] sm:$0xff]
    %v2112 = vld [vmem:[%s4 + $0x58] sm:$0xff]
    %v2113 = vld [vmem:[%s4 + $0x60] sm:$0xff]
    %v2114 = vld [vmem:[%s4 + $0x68] sm:$0xff]
    %v2115 = vld [vmem:[%s4 + $0x70] sm:$0xff]
    %v2116 = vld [vmem:[%s4 + $0x78] sm:$0xff]
    %v2118 = vrot.slane %v2098, 1
    %2120 = vmatprep.subr.mxu0 0.0
    %2121 = vmatpush1.msra.mxu0 %v2116
    %2122 = vmatprep.subr.mxu0 0.0
    %2123 = vmatpush1.msra.mxu0 %v2115
    %2124 = vmatprep.subr.mxu0 0.0
    %2125 = vmatpush1.msra.mxu0 %v2114
    %2126 = vmatprep.subr.mxu0 0.0
    %2127 = vmatpush1.msra.mxu0 %v2113
    %2128 = vmatprep.subr.mxu0 0.0
    %2129 = vmatpush1.msra.mxu0 %v2112
    %2130 = vmatprep.subr.mxu0 0.0
    %2131 = vmatpush1.msra.mxu0 %v2111
    %2132 = vmatprep.subr.mxu0 0.0
    %2133 = vmatpush1.msra.mxu0 %v2110
    %2134 = vmatprep.subr.mxu0 0.0
    %2135 = vmatpush1.msra.mxu0 %v2109
    %2136 = vmatprep.subr.mxu0 0.0
    %2137 = vmatpush1.msra.mxu0 %v2108
    %2138 = vmatprep.subr.mxu0 0.0
    %2139 = vmatpush1.msra.mxu0 %v2107
    %2140 = vmatprep.subr.mxu0 0.0
    %2141 = vmatpush1.msra.mxu0 %v2106
    %2142 = vmatprep.subr.mxu0 0.0
    %2143 = vmatpush1.msra.mxu0 %v2105
    %2144 = vmatprep.subr.mxu0 0.0
    %2145 = vmatpush1.msra.mxu0 %v2104
    %2146 = vmatprep.subr.mxu0 0.0
    %2147 = vmatpush1.msra.mxu0 %v2103
    %2148 = vmatprep.subr.mxu0 0.0
    %2149 = vmatpush1.msra.mxu0 %v2102
    %2150 = vmatprep.subr.mxu0 0.0
    %2151 = vmatpush1.msra.mxu0 %v2101
    %2152 = vmatprep.subr.mxu0 0.0
    %2153 = vmatpush2.msra.mxu0 0.0
    %2154 = vmatprep.subr.mxu0 0.0
    %2155 = vmatpush2.msra.mxu0 0.0
    %2156 = vmatprep.subr.mxu0 0.0
    %2157 = vmatpush2.msra.mxu0 0.0
    %2158 = vmatprep.subr.mxu0 0.0
    %2159 = vmatpush2.msra.mxu0 0.0
    %2160 = vmatprep.subr.mxu0 0.0
    %2161 = vmatpush2.msra.mxu0 0.0
    %2162 = vmatprep.subr.mxu0 0.0
    %2163 = vmatpush2.msra.mxu0 0.0
    %2164 = vmatprep.subr.mxu0 0.0
    %2165 = vmatpush2.msra.mxu0 0.0
    %2166 = vmatprep.subr.mxu0 0.0
    %2167 = vmatpush2.msra.mxu0 0.0
    %2168 = vmatprep.subr.mxu0 0.0
    %2169 = vmatpush2.msra.mxu0 0.0
    %2170 = vmatprep.subr.mxu0 0.0
    %2171 = vmatpush2.msra.mxu0 0.0
    %2172 = vmatprep.subr.mxu0 0.0
    %2173 = vmatpush2.msra.mxu0 0.0
    %2174 = vmatprep.subr.mxu0 0.0
    %2175 = vmatpush2.msra.mxu0 0.0
    %2176 = vmatprep.subr.mxu0 0.0
    %2177 = vmatpush2.msra.mxu0 0.0
    %2178 = vmatprep.subr.mxu0 0.0
    %2179 = vmatpush2.msra.mxu0 0.0
    %2180 = vmatprep.subr.mxu0 0.0
    %2181 = vmatpush2.msra.mxu0 0.0
    %2182 = vmatprep.subr.mxu0 0.0
    %2183 = vmatpush2.msra.mxu0 0.0
    %2184 = vmatprep.mubr.f32.mxu0 0.0
    %2185 = vmatmul.mubr.f32.gmra.mxu0 %v2118
    %v2186 = vpop.f32.mrf.mxu0
    %v2187 = vadd.f32 %v2099, %v2186
    %v2188 = vpop.f32.mrf.mxu0
    %2189 = vdwg.mxu0
    %v2190 = vmax.f32 %v2187, 0.0
    %v2191 = vld [vmem:[%s5] sm:$0xff]
    %v2192 = vld [vmem:[%s5 + $0x8] sm:$0xff]
    %v2193 = vld [vmem:[%s5 + $0x10] sm:$0xff]
    %v2194 = vld [vmem:[%s5 + $0x18] sm:$0xff]
    %vm2195 = vcmask 261120
    %v2197 = vsel %vm2195, %v2190, 0
    %2199 = vmatprep.subr.mxu0 0.0
    %2200 = vmatpush1.msra.mxu0 0.0
    %2201 = vmatprep.subr.mxu0 0.0
    %2202 = vmatpush1.msra.mxu0 0.0
    %2203 = vmatprep.subr.mxu0 0.0
    %2204 = vmatpush1.msra.mxu0 0.0
    %2205 = vmatprep.subr.mxu0 0.0
    %2206 = vmatpush1.msra.mxu0 0.0
    %2207 = vmatprep.subr.mxu0 0.0
    %2208 = vmatpush1.msra.mxu0 0.0
    %2209 = vmatprep.subr.mxu0 0.0
    %2210 = vmatpush1.msra.mxu0 0.0
    %2211 = vmatprep.subr.mxu0 0.0
    %2212 = vmatpush1.msra.mxu0 0.0
    %2213 = vmatprep.subr.mxu0 0.0
    %2214 = vmatpush1.msra.mxu0 0.0
    %2215 = vmatprep.subr.mxu0 0.0
    %2216 = vmatpush1.msra.mxu0 0.0
    %2217 = vmatprep.subr.mxu0 0.0
    %2218 = vmatpush1.msra.mxu0 0.0
    %2219 = vmatprep.subr.mxu0 0.0
    %2220 = vmatpush1.msra.mxu0 0.0
    %2221 = vmatprep.subr.mxu0 0.0
    %2222 = vmatpush1.msra.mxu0 0.0
    %2223 = vmatprep.subr.mxu0 0.0
    %2224 = vmatpush1.msra.mxu0 %v2194
    %2225 = vmatprep.subr.mxu0 0.0
    %2226 = vmatpush1.msra.mxu0 %v2193
    %2227 = vmatprep.subr.mxu0 0.0
    %2228 = vmatpush1.msra.mxu0 %v2192
    %2229 = vmatprep.subr.mxu0 0.0
    %2230 = vmatpush1.msra.mxu0 %v2191
    %2231 = vmatprep.subr.mxu0 0.0
    %2232 = vmatpush2.msra.mxu0 0.0
    %2233 = vmatprep.subr.mxu0 0.0
    %2234 = vmatpush2.msra.mxu0 0.0
    %2235 = vmatprep.subr.mxu0 0.0
    %2236 = vmatpush2.msra.mxu0 0.0
    %2237 = vmatprep.subr.mxu0 0.0
    %2238 = vmatpush2.msra.mxu0 0.0
    %2239 = vmatprep.subr.mxu0 0.0
    %2240 = vmatpush2.msra.mxu0 0.0
    %2241 = vmatprep.subr.mxu0 0.0
    %2242 = vmatpush2.msra.mxu0 0.0
    %2243 = vmatprep.subr.mxu0 0.0
    %2244 = vmatpush2.msra.mxu0 0.0
    %2245 = vmatprep.subr.mxu0 0.0
    %2246 = vmatpush2.msra.mxu0 0.0
    %2247 = vmatprep.subr.mxu0 0.0
    %2248 = vmatpush2.msra.mxu0 0.0
    %2249 = vmatprep.subr.mxu0 0.0
    %2250 = vmatpush2.msra.mxu0 0.0
    %2251 = vmatprep.subr.mxu0 0.0
    %2252 = vmatpush2.msra.mxu0 0.0
    %2253 = vmatprep.subr.mxu0 0.0
    %2254 = vmatpush2.msra.mxu0 0.0
    %2255 = vmatprep.subr.mxu0 0.0
    %2256 = vmatpush2.msra.mxu0 0.0
    %2257 = vmatprep.subr.mxu0 0.0
    %2258 = vmatpush2.msra.mxu0 0.0
    %2259 = vmatprep.subr.mxu0 0.0
    %2260 = vmatpush2.msra.mxu0 0.0
    %2261 = vmatprep.subr.mxu0 0.0
    %2262 = vmatpush2.msra.mxu0 0.0
    %2263 = vmatprep.mubr.f32.mxu0 0.0
    %2264 = vmatmul.mubr.f32.gmra.mxu0 %v2197
    %v2265 = vpop.f32.mrf.mxu0
    %v2266 = vadd.f32 %v2100, %v2265
    %v2267 = vpop.f32.mrf.mxu0
    %2268 = vdwg.mxu0
    %v2269 = vmax.f32 %v2266, 0.0
    %vm2270 = vcmask 8192
    %v2271 = vsel %vm2270, %v2269, -inf
    %2272 = vmax.xlane.f32.xlu0 %v2271
    %v2273 = vpop.xlane.xlu0 %2272
    %v2274 = vsub.f32 %v2269, %v2273
    %v2275 = vmul.f32 %v2274, 1.442695
    %v2276 = vpow.pop %v2275
    %v2277 = vsel %vm2270, %v2276, 0.0
    %2278 = vadd.xlane.f32.xlu0 %v2277
    %v2279 = vpop.xlane.xlu0 %2278
    %v2280 = vlog2.pop %v2279
    %v2281 = vmul.f32 %v2280, 0.6931472
    %v2282 = vsub.f32 %v2274, %v2281
    %2283 = vst.msk [vmem:[#allocation11] sm:$0x1] %vm2270, %v2282
    // Predicated region
    $region46: #{tpu_custom_call.1} parent=1 // pred_check
      _
    $region47: #{tpu_custom_call.1} parent=1 // pred_check_branch
      %2285 = sbr.rel (0) target = $region49
    $region48: #{tpu_custom_call.1} parent=1 // pred_region
      %s2287 = ssub.s32 16, 16
      %2288 = vsyncadd [#allocation4], %s2287
      %s2290 = sshll.u32 [#allocation11], 4
      %s2291 = int_to_ptr.vmem [resolvable:$true] %s2290
      %2293 = dma.vmem_to_hbm [thread:$0]  %s2291, 16, %s7, [#allocation4]
    $region49: #{tpu_custom_call.1} parent=1 // pred_fallthru
      _
    // Predicated region
    $region50: #{tpu_custom_call.1} parent=1 // pred_check
      _
    $region51: #{tpu_custom_call.1} parent=1 // pred_check_branch
      %2295 = sbr.rel (0) target = $region53
    $region52: #{tpu_custom_call.1} parent=1 // pred_region
      %2296 = dma.done [#allocation4], 16
    $region53: #{tpu_custom_call.1} parent=1 // pred_fallthru
      _
    %2297 = vsyncpa [#allocation3], 1
    %2298 = vsyncpa [#allocation10], 1
    %2299 = vsyncpa [#allocation4], 1
    %2300 = vsyncpa [#allocation5], 1
    %2301 = vsyncpa [#allocation7], 1

</llo_original>
